<compile_context>
chip_gen: v7x
topology: tpu7x:2x2x1
jax: 0.10.0
libtpu: 0.0.40
codegen_flags: <defaults>
</compile_context>

<pallas_src>
import math
import functools

import jax
import jax.numpy as jnp
from jax import lax
from jax.experimental import pallas as pl
from jax.experimental.pallas import tpu as pltpu

_VMEM_LIMIT = 48 * 1024 * 1024   # > 32 MiB scoped default, <= v7x 64 MiB physical


def _pick_tm(M):
    """Row-tile for flattened (B*T) matmul / LN kernels."""
    for tm in (1024, 512, 256, 128, 64, 32, 16, 8):
        if M % tm == 0:
            return tm
    return M


# ----------------------------- fused QKV projection --------------------------

def _dense_kernel(x_ref, w_ref, b_ref, o_ref):
    # x: (tm, Cin)  w: (Cin, Cout) bf16  b: (1, Cout) f32
    x = x_ref[...].astype(jnp.bfloat16)
    acc = jnp.dot(x, w_ref[...], preferred_element_type=jnp.float32) + b_ref[...]
    o_ref[...] = acc.astype(o_ref.dtype)


def dense(x, w, b, out_dtype=jnp.float32):
    """1x1 Conv1d == per-row matmul over flattened (B*T) rows."""
    B, T, Cin = x.shape
    Cout = w.shape[1]
    M = B * T
    tm = _pick_tm(M)
    out = pl.pallas_call(
        _dense_kernel,
        out_shape=jax.ShapeDtypeStruct((M, Cout), out_dtype),
        grid=(M // tm,),
        in_specs=[
            pl.BlockSpec((tm, Cin), lambda i: (i, 0)),
            pl.BlockSpec((Cin, Cout), lambda i: (0, 0)),
            pl.BlockSpec((1, Cout), lambda i: (0, 0)),
        ],
        out_specs=pl.BlockSpec((tm, Cout), lambda i: (i, 0)),
        compiler_params=pltpu.CompilerParams(
            dimension_semantics=("parallel",), vmem_limit_bytes=_VMEM_LIMIT),
    )(x.reshape(M, Cin), w, b)
    return out.reshape(B, T, Cout)


# ------------- output projection + residual add + LayerNorm (fused) ----------

def _proj_res_ln_kernel(c_ref, w_ref, b_ref, x_ref, g_ref, bb_ref, o_ref, *, eps):
    # c: (tm, C) bf16  w: (C, C) bf16  b: (1, C) f32  x: (tm, C) f32
    y = jnp.dot(c_ref[...].astype(jnp.bfloat16), w_ref[...],
                preferred_element_type=jnp.float32) + b_ref[...]
    z = x_ref[...] + y                                  # residual add (f32)
    mean = jnp.mean(z, axis=-1, keepdims=True)
    zc = z - mean
    var = jnp.mean(zc * zc, axis=-1, keepdims=True)
    o_ref[...] = zc * lax.rsqrt(var + eps) * g_ref[...] + bb_ref[...]


def proj_residual_ln(ctx, w, b, x, gamma, beta, eps=1e-5):
    """LN(x + ctx @ W + b) over channels, rows tiled over flattened (B*T)."""
    B, T, C = x.shape
    M = B * T
    tm = _pick_tm(M)
    kern = functools.partial(_proj_res_ln_kernel, eps=eps)
    out = pl.pallas_call(
        kern,
        out_shape=jax.ShapeDtypeStruct((M, C), jnp.float32),
        grid=(M // tm,),
        in_specs=[
            pl.BlockSpec((tm, C), lambda i: (i, 0)),
            pl.BlockSpec((C, C), lambda i: (0, 0)),
            pl.BlockSpec((1, C), lambda i: (0, 0)),
            pl.BlockSpec((tm, C), lambda i: (i, 0)),
            pl.BlockSpec((1, C), lambda i: (0, 0)),
            pl.BlockSpec((1, C), lambda i: (0, 0)),
        ],
        out_specs=pl.BlockSpec((tm, C), lambda i: (i, 0)),
        compiler_params=pltpu.CompilerParams(
            dimension_semantics=("parallel",), vmem_limit_bytes=_VMEM_LIMIT),
    )(ctx.reshape(M, C), w, b, x.reshape(M, C), gamma, beta)
    return out.reshape(B, T, C)


# ------ FFN: conv1 + relu + conv2 (+ masks) + residual + LayerNorm (fused) ---

def _ffn_ln_kernel(len_ref, x_ref, w1_ref, b1_ref, w2_ref, b2_ref,
                   g_ref, bb_ref, o_ref, *, K, pad_l, T, eps):
    # x: (1, T, C) f32   w1: (K, C, F) bf16   w2: (K, F, C) bf16
    length = len_ref[pl.program_id(0)]
    x = x_ref[0]                                          # (T, C) f32
    row = lax.broadcasted_iota(jnp.int32, (T, 1), 0)
    F = w1_ref.shape[2]
    C = w2_ref.shape[2]

    def conv(src_f32, w_ref_, Cout):
        acc = jnp.zeros((T, Cout), jnp.float32)
        for k in range(K):                                # static unroll over taps
            off = k - pad_l
            # shifted view via XLU rotate (no unaligned sublane slices, no jnp.pad)
            term = src_f32 if off == 0 else pltpu.roll(src_f32, shift=(-off) % T, axis=0)
            src = row + off
            valid = (src >= 0) & (src < length)           # "same" pad + input mask
            term = jnp.where(valid, term, 0.0)
            acc = acc + jnp.dot(term.astype(jnp.bfloat16), w_ref_[k],
                                preferred_element_type=jnp.float32)
        return acc

    h = jnp.maximum(conv(x, w1_ref, F) + b1_ref[...], 0.0)        # (T, F) f32, ReLU
    y = conv(h, w2_ref, C) + b2_ref[...]                          # (T, C) f32
    y = jnp.where(row < length, y, 0.0)                           # FFN output mask

    z = x + y                                                     # residual add
    mean = jnp.mean(z, axis=-1, keepdims=True)
    zc = z - mean
    var = jnp.mean(zc * zc, axis=-1, keepdims=True)
    o_ref[0] = zc * lax.rsqrt(var + eps) * g_ref[...] + bb_ref[...]


def ffn_residual_ln(x, w1, b1, w2, b2, lengths, gamma, beta, eps=1e-5):
    """LN(x + conv2(mask*relu(conv1(mask*x)))*mask), one grid step per batch elem."""
    B, T, C = x.shape
    K, _, F = w1.shape
    pad_l = (K - 1) // 2
    kern = functools.partial(_ffn_ln_kernel, K=K, pad_l=pad_l, T=T, eps=eps)
    return pl.pallas_call(
        kern,
        out_shape=jax.ShapeDtypeStruct((B, T, C), jnp.float32),
        grid_spec=pltpu.PrefetchScalarGridSpec(
            num_scalar_prefetch=1,
            grid=(B,),
            in_specs=[
                pl.BlockSpec((1, T, C), lambda bi, lens: (bi, 0, 0)),
                pl.BlockSpec((K, C, F), lambda bi, lens: (0, 0, 0)),
                pl.BlockSpec((1, F), lambda bi, lens: (0, 0)),
                pl.BlockSpec((K, F, C), lambda bi, lens: (0, 0, 0)),
                pl.BlockSpec((1, C), lambda bi, lens: (0, 0)),
                pl.BlockSpec((1, C), lambda bi, lens: (0, 0)),
                pl.BlockSpec((1, C), lambda bi, lens: (0, 0)),
            ],
            out_specs=pl.BlockSpec((1, T, C), lambda bi, lens: (bi, 0, 0)),
        ),
        compiler_params=pltpu.CompilerParams(
            dimension_semantics=("parallel",), vmem_limit_bytes=_VMEM_LIMIT),
    )(lengths, x, w1, b1, w2, b2, gamma, beta)


# -------- attention: all heads per batch elem, rel-pos & mask in-kernel ------

def _attention_kernel(len_ref, q_ref, k_ref, v_ref, relk_ref, relv_ref, o_ref,
                      *, T, window):
    length = len_ref[pl.program_id(0)]
    q = q_ref[0]                       # (H, T, dk) bf16; 1/sqrt(dk) folded into Wq/bq
    k = k_ref[0]
    v = v_ref[0]

    # scores[h] = q[h] @ k[h]^T, batched over heads (no materialized transpose)
    s = lax.dot_general(q, k, (((2,), (2,)), ((0,), (0,))),
                        preferred_element_type=jnp.float32)              # (H, T, T)

    # relative-key bias from the raw (2*ws+1, dk) table:
    #   bias[h, i, j] = q[h, i] . rel_k[(j - i) + ws]   for |j - i| <= ws, else 0
    small = lax.dot_general(q, relk_ref[...], (((2,), (1,)), ((), ())),
                            preferred_element_type=jnp.float32)          # (H, T, 2ws+1)
    row = lax.broadcasted_iota(jnp.int32, (T, T), 0)
    col = lax.broadcasted_iota(jnp.int32, (T, T), 1)
    diff = col - row
    W = min(window, T - 1)
    for r in range(-W, W + 1):                                           # static loop
        s = s + jnp.where(diff == r, small[:, :, window + r:window + r + 1], 0.0)

    # mask built from the prefetched length (no [B,1,T,T] HBM mask tensor);
    # fully-padded rows become a uniform softmax, matching torch.
    valid = (row < length) & (col < length)
    s = jnp.where(valid, s, jnp.float32(-1e4))

    s = s - jnp.max(s, axis=-1, keepdims=True)
    e = jnp.exp(s)
    p = e / jnp.sum(e, axis=-1, keepdims=True)                           # (H, T, T) f32

    ctx = lax.dot_general(p.astype(v.dtype), v, (((2,), (1,)), ((0,), (0,))),
                          preferred_element_type=jnp.float32)            # (H, T, dk)

    # relative-value contribution: ctx[h, i] += sum_r p[h, i, i+r] * rel_v[r + ws]
    relv = relv_ref[...]
    for r in range(-W, W + 1):
        w_r = jnp.sum(jnp.where(diff == r, p, 0.0), axis=-1, keepdims=True)  # (H, T, 1)
        ctx = ctx + w_r * relv[window + r:window + r + 1, :]
    o_ref[0] = ctx.astype(o_ref.dtype)


def attention(qh, kh, vh, relk, relv, lengths, window_size):
    """qh/kh/vh: [B,H,T,dk] bf16; relk bf16 / relv f32: [2*ws+1, dk] -> ctx [B,H,T,dk] bf16."""
    B, H, T, dk = qh.shape
    R = relk.shape[0]
    kern = functools.partial(_attention_kernel, T=T, window=window_size)
    return pl.pallas_call(
        kern,
        out_shape=jax.ShapeDtypeStruct((B, H, T, dk), jnp.bfloat16),
        grid_spec=pltpu.PrefetchScalarGridSpec(
            num_scalar_prefetch=1,
            grid=(B,),
            in_specs=[
                pl.BlockSpec((1, H, T, dk), lambda b, lens: (b, 0, 0, 0)),
                pl.BlockSpec((1, H, T, dk), lambda b, lens: (b, 0, 0, 0)),
                pl.BlockSpec((1, H, T, dk), lambda b, lens: (b, 0, 0, 0)),
                pl.BlockSpec((R, dk), lambda b, lens: (0, 0)),
                pl.BlockSpec((R, dk), lambda b, lens: (0, 0)),
            ],
            out_specs=pl.BlockSpec((1, H, T, dk), lambda b, lens: (b, 0, 0, 0)),
        ),
        compiler_params=pltpu.CompilerParams(
            dimension_semantics=("parallel",),
            vmem_limit_bytes=_VMEM_LIMIT),
    )(lengths, qh, kh, vh, relk, relv)


# ------------------------------ encoder layers -------------------------------

def encoder_layer(x, lengths, p, n_heads, kernel_size, window_size):
    B, T, C = x.shape
    dk = C // n_heads

    # fused QKV projection (single matmul, bf16 output for the attention kernel)
    qkv = dense(x, p["wqkv"], p["bqkv"], out_dtype=jnp.bfloat16)        # [B,T,3C]
    q, k, v = jnp.split(qkv, 3, axis=-1)

    def heads(t):
        return t.reshape(B, T, n_heads, dk).transpose(0, 2, 1, 3)       # [B,H,T,dk]

    ctx = attention(heads(q), heads(k), heads(v), p["relk"], p["relv"],
                    lengths, window_size)
    ctx = ctx.transpose(0, 2, 1, 3).reshape(B, T, C)                    # merge heads

    # out-projection + residual + LN fused
    x = proj_residual_ln(ctx, p["wo"], p["bo"], x, p["ln1_g"], p["ln1_b"])

    # FFN (conv1+relu+conv2+masks) + residual + LN fused
    x = ffn_residual_ln(x, p["w1"], p["b1"], p["w2"], p["b2"],
                        lengths, p["ln2_g"], p["ln2_b"])
    return x


def make_forward(n_heads, n_layers, kernel_size, window_size=4):
    def forward(params, text, text_lengths):
        B, T = text.shape
        lengths = text_lengths.astype(jnp.int32)
        mask1d = (jnp.arange(T)[None, :] < lengths[:, None]).astype(jnp.float32)
        x = jnp.take(params["emb"], text, axis=0) * mask1d[:, :, None]  # [B,T,C]
        for i in range(n_layers):
            x = encoder_layer(x, lengths, params["layers"][i],
                              n_heads, kernel_size, window_size)
        x = x * mask1d[:, :, None]
        text_out = jnp.transpose(x, (0, 2, 1))                          # [B,C,T]
        text_mask = mask1d[:, None, :]                                  # [B,1,T]
        return text_out, text_mask
    return jax.jit(forward)


# ------------------------------ parameters -----------------------------------

def init_params(key, hidden, filter_ch, n_heads, n_layers, kernel_size, window_size=4):
    """Raw f32 'torch-like' parameters."""
    dk = hidden // n_heads
    keys = iter(jax.random.split(key, 8 * n_layers + 4))
    nk = lambda: next(keys)
    layers = []
    for _ in range(n_layers):
        layers.append(dict(
            wq=jax.random.normal(nk(), (hidden, hidden), jnp.float32) * 0.05,
            bq=jnp.zeros((1, hidden), jnp.float32),
            wk=jax.random.normal(nk(), (hidden, hidden), jnp.float32) * 0.05,
            bk=jnp.zeros((1, hidden), jnp.float32),
            wv=jax.random.normal(nk(), (hidden, hidden), jnp.float32) * 0.05,
            bv=jnp.zeros((1, hidden), jnp.float32),
            wo=jax.random.normal(nk(), (hidden, hidden), jnp.float32) * 0.05,
            bo=jnp.zeros((1, hidden), jnp.float32),
            emb_rel_k=jax.random.normal(nk(), (2 * window_size + 1, dk), jnp.float32) * dk ** -0.5,
            emb_rel_v=jax.random.normal(nk(), (2 * window_size + 1, dk), jnp.float32) * dk ** -0.5,
            w1=jax.random.normal(nk(), (kernel_size, hidden, filter_ch), jnp.float32) * 0.05,
            b1=jnp.zeros((1, filter_ch), jnp.float32),
            w2=jax.random.normal(nk(), (kernel_size, filter_ch, hidden), jnp.float32) * 0.05,
            b2=jnp.zeros((1, hidden), jnp.float32),
            ln1_g=jnp.ones((1, hidden), jnp.float32),
            ln1_b=jnp.zeros((1, hidden), jnp.float32),
            ln2_g=jnp.ones((1, hidden), jnp.float32),
            ln2_b=jnp.zeros((1, hidden), jnp.float32),
        ))
    emb = jax.random.normal(nk(), (256, hidden), jnp.float32) * hidden ** -0.5
    return {"emb": emb, "layers": layers}


def prepare_params(raw, n_heads):
    """Kernel-ready params: QKV fused, 1/sqrt(dk) folded into Wq/bq, MXU weights in bf16."""
    hidden = raw["emb"].shape[1]
    scale = 1.0 / math.sqrt(hidden // n_heads)
    layers = []
    for p in raw["layers"]:
        wqkv = jnp.concatenate([p["wq"] * scale, p["wk"], p["wv"]], axis=1)
        bqkv = jnp.concatenate([p["bq"] * scale, p["bk"], p["bv"]], axis=1)
        layers.append(dict(
            wqkv=wqkv.astype(jnp.bfloat16), bqkv=bqkv,
            wo=p["wo"].astype(jnp.bfloat16), bo=p["bo"],
            relk=p["emb_rel_k"].astype(jnp.bfloat16), relv=p["emb_rel_v"],
            w1=p["w1"].astype(jnp.bfloat16), b1=p["b1"],
            w2=p["w2"].astype(jnp.bfloat16), b2=p["b2"],
            ln1_g=p["ln1_g"], ln1_b=p["ln1_b"],
            ln2_g=p["ln2_g"], ln2_b=p["ln2_b"],
        ))
    return {"emb": raw["emb"], "layers": layers}


# ----------------------------------- main -------------------------------------

if __name__ == "__main__":
    # small config consistent with TextEncoder(out_ch, hidden, filter, heads, layers, k, p)
    B, T = 2, 8
    hidden_channels = 32
    filter_channels = 64
    n_heads = 2
    n_layers = 2
    kernel_size = 3
    window_size = 4          # attentions.Encoder default
    # p_dropout: identity at eval -> omitted

    key = jax.random.PRNGKey(0)
    k_param, k_text = jax.random.split(key)
    raw = init_params(k_param, hidden_channels, filter_channels,
                      n_heads, n_layers, kernel_size, window_size)
    params = prepare_params(raw, n_heads)

    text = jax.random.randint(k_text, (B, T), 0, 256, dtype=jnp.int32)
    text_lengths = jnp.array([T, 5], dtype=jnp.int32)

    forward = make_forward(n_heads, n_layers, kernel_size, window_size)
    out, out_mask = forward(params, text, text_lengths)
    jax.block_until_ready((out, out_mask))

    assert out.shape == (B, hidden_channels, T)
    assert out_mask.shape == (B, 1, T)
    print("KERNEL_OK")
</pallas_src>

<mosaic_0001>
module attributes {stable_mosaic.version = 11 : i64} {
  func.func @_dense_kernel(%arg0: i32, %arg1: memref<16x32xf32, #tpu.memory_space<vmem>>, %arg2: memref<32x96xbf16, #tpu.memory_space<vmem>>, %arg3: memref<1x96xf32, #tpu.memory_space<vmem>>, %arg4: memref<16x96xbf16, #tpu.memory_space<vmem>>) attributes {dimension_semantics = [#tpu.dimension_semantics<parallel>], iteration_bounds = array<i64: 1>, scalar_prefetch = 0 : i64, scratch_operands = 0 : i64, tpu.core_type = #tpu.core_type<tc>, window_params = [{transform_indices = @transform_0, window_bounds = array<i64: 16, 32>}, {pipeline_mode = #tpu.pipeline_mode<synchronous>, transform_indices = @transform_1, window_bounds = array<i64: 32, 96>}, {pipeline_mode = #tpu.pipeline_mode<synchronous>, transform_indices = @transform_2, window_bounds = array<i64: 1, 96>}, {transform_indices = @transform_3, window_bounds = array<i64: 16, 96>}]} {
    %c0 = arith.constant 0 : index
    %c0_0 = arith.constant 0 : index
    %0 = vector.load %arg1[%c0, %c0_0] : memref<16x32xf32, #tpu.memory_space<vmem>>, vector<16x32xf32>
    %1 = arith.truncf %0 : vector<16x32xf32> to vector<16x32xbf16>
    %c0_1 = arith.constant 0 : index
    %c0_2 = arith.constant 0 : index
    %2 = vector.load %arg2[%c0_1, %c0_2] : memref<32x96xbf16, #tpu.memory_space<vmem>>, vector<32x96xbf16>
    %cst = arith.constant dense<0.000000e+00> : vector<16x96xf32>
    %3 = tpu.matmul %1, %2, %cst {dimension_numbers = #tpu.dot_dimension_numbers<[1], [0], [0], [1], [0, 0, 1, 1], [], []>} : vector<16x32xbf16>, vector<32x96xbf16>, vector<16x96xf32> -> vector<16x96xf32>
    %c0_3 = arith.constant 0 : index
    %c0_4 = arith.constant 0 : index
    %4 = vector.load %arg3[%c0_3, %c0_4] : memref<1x96xf32, #tpu.memory_space<vmem>>, vector<1x96xf32>
    %5 = vector.broadcast %4 : vector<1x96xf32> to vector<16x96xf32>
    %6 = arith.addf %3, %5 : vector<16x96xf32>
    %7 = arith.truncf %6 : vector<16x96xf32> to vector<16x96xbf16>
    %c0_5 = arith.constant 0 : index
    %c0_6 = arith.constant 0 : index
    %8 = vector.load %arg4[%c0_5, %c0_6] : memref<16x96xbf16, #tpu.memory_space<vmem>>, vector<16x96xbf16>
    tpu.vector_store %arg4[%c0_5, %c0_6], %7 {strides = array<i32>} : memref<16x96xbf16, #tpu.memory_space<vmem>>, vector<16x96xbf16>,
    return
  }
  func.func @transform_0(%arg0: i32) -> (i32, i32) {
    %c0_i32 = arith.constant 0 : i32
    %c0_i32_0 = arith.constant 0 : i32
    return %arg0, %c0_i32 : i32, i32
  }
  func.func @transform_1(%arg0: i32) -> (i32, i32) {
    %c0_i32 = arith.constant 0 : i32
    %c0_i32_0 = arith.constant 0 : i32
    %c0_i32_1 = arith.constant 0 : i32
    return %c0_i32, %c0_i32_0 : i32, i32
  }
  func.func @transform_2(%arg0: i32) -> (i32, i32) {
    %c0_i32 = arith.constant 0 : i32
    %c0_i32_0 = arith.constant 0 : i32
    %c0_i32_1 = arith.constant 0 : i32
    return %c0_i32, %c0_i32_0 : i32, i32
  }
  func.func @transform_3(%arg0: i32) -> (i32, i32) {
    %c0_i32 = arith.constant 0 : i32
    %c0_i32_0 = arith.constant 0 : i32
    return %arg0, %c0_i32 : i32, i32
  }
}

module attributes {stable_mosaic.version = 11 : i64} {
  func.func @_attention_kernel(%arg0: i32, %arg1: memref<2xi32, #tpu.memory_space<smem>>, %arg2: memref<1x2x8x16xbf16, #tpu.memory_space<vmem>>, %arg3: memref<1x2x8x16xbf16, #tpu.memory_space<vmem>>, %arg4: memref<1x2x8x16xbf16, #tpu.memory_space<vmem>>, %arg5: memref<9x16xbf16, #tpu.memory_space<vmem>>, %arg6: memref<9x16xf32, #tpu.memory_space<vmem>>, %arg7: memref<1x2x8x16xbf16, #tpu.memory_space<vmem>>) attributes {dimension_semantics = [#tpu.dimension_semantics<parallel>], iteration_bounds = array<i64: 2>, scalar_prefetch = 1 : i64, scratch_operands = 0 : i64, tpu.core_type = #tpu.core_type<tc>, window_params = [{transform_indices = @transform_0, window_bounds = array<i64: 1, 2, 8, 16>}, {transform_indices = @transform_1, window_bounds = array<i64: 1, 2, 8, 16>}, {transform_indices = @transform_2, window_bounds = array<i64: 1, 2, 8, 16>}, {pipeline_mode = #tpu.pipeline_mode<synchronous>, transform_indices = @transform_3, window_bounds = array<i64: 9, 16>}, {pipeline_mode = #tpu.pipeline_mode<synchronous>, transform_indices = @transform_4, window_bounds = array<i64: 9, 16>}, {transform_indices = @transform_5, window_bounds = array<i64: 1, 2, 8, 16>}]} {
    %0 = arith.index_cast %arg0 : i32 to index
    %1 = memref.load %arg1[%0] : memref<2xi32, #tpu.memory_space<smem>>
    %c0 = arith.constant 0 : index
    %c0_0 = arith.constant 0 : index
    %c0_1 = arith.constant 0 : index
    %c0_2 = arith.constant 0 : index
    %2 = vector.load %arg2[%c0, %c0_0, %c0_1, %c0_2] : memref<1x2x8x16xbf16, #tpu.memory_space<vmem>>, vector<1x2x8x16xbf16>
    %3 = vector.shape_cast %2 : vector<1x2x8x16xbf16> to vector<2x8x16xbf16>
    %c0_3 = arith.constant 0 : index
    %c0_4 = arith.constant 0 : index
    %c0_5 = arith.constant 0 : index
    %c0_6 = arith.constant 0 : index
    %4 = vector.load %arg3[%c0_3, %c0_4, %c0_5, %c0_6] : memref<1x2x8x16xbf16, #tpu.memory_space<vmem>>, vector<1x2x8x16xbf16>
    %5 = vector.shape_cast %4 : vector<1x2x8x16xbf16> to vector<2x8x16xbf16>
    %c0_7 = arith.constant 0 : index
    %c0_8 = arith.constant 0 : index
    %c0_9 = arith.constant 0 : index
    %c0_10 = arith.constant 0 : index
    %6 = vector.load %arg4[%c0_7, %c0_8, %c0_9, %c0_10] : memref<1x2x8x16xbf16, #tpu.memory_space<vmem>>, vector<1x2x8x16xbf16>
    %7 = vector.shape_cast %6 : vector<1x2x8x16xbf16> to vector<2x8x16xbf16>
    %cst = arith.constant dense<0.000000e+00> : vector<2x8x8xf32>
    %8 = tpu.matmul %3, %5, %cst {dimension_numbers = #tpu.dot_dimension_numbers<[2], [2], [1], [1], [0, 0, 0, 1, 1, 1], [0], [0]>} : vector<2x8x16xbf16>, vector<2x8x16xbf16>, vector<2x8x8xf32> -> vector<2x8x8xf32>
    %c0_11 = arith.constant 0 : index
    %c0_12 = arith.constant 0 : index
    %9 = vector.load %arg5[%c0_11, %c0_12] : memref<9x16xbf16, #tpu.memory_space<vmem>>, vector<9x16xbf16>
    %cst_13 = arith.constant dense<0.000000e+00> : vector<2x8x9xf32>
    %10 = tpu.matmul %3, %9, %cst_13 {dimension_numbers = #tpu.dot_dimension_numbers<[2], [1], [0, 1], [0], [0, 0, 0, 1, 1, 0], [], []>} : vector<2x8x16xbf16>, vector<9x16xbf16>, vector<2x8x9xf32> -> vector<2x8x9xf32>
    %11 = tpu.iota {dimensions = array<i32: 0>} : vector<8x8xi32>
    %12 = tpu.iota {dimensions = array<i32: 1>} : vector<8x8xi32>
    %13 = arith.subi %12, %11 : vector<8x8xi32>
    %c-4_i32 = arith.constant -4 : i32
    %14 = vector.broadcast %c-4_i32 : i32 to vector<8x8xi32>
    %15 = arith.cmpi eq, %13, %14 : vector<8x8xi32>
    %16 = vector.extract_strided_slice %10 {offsets = [0, 0, 0], sizes = [2, 8, 1], strides = [1, 1, 1]} : vector<2x8x9xf32> to vector<2x8x1xf32>
    %cst_14 = arith.constant 0.000000e+00 : f32
    %17 = vector.shape_cast %15 : vector<8x8xi1> to vector<1x8x8xi1>
    %18 = vector.broadcast %17 : vector<1x8x8xi1> to vector<2x8x8xi1>
    %19 = vector.shape_cast %16 : vector<2x8x1xf32> to vector<2x8x1xf32>
    %20 = vector.broadcast %19 : vector<2x8x1xf32> to vector<2x8x8xf32>
    %21 = vector.broadcast %cst_14 : f32 to vector<2x8x8xf32>
    %22 = arith.select %18, %20, %21 : vector<2x8x8xi1>, vector<2x8x8xf32>
    %23 = arith.addf %8, %22 : vector<2x8x8xf32>
    %c-3_i32 = arith.constant -3 : i32
    %24 = vector.broadcast %c-3_i32 : i32 to vector<8x8xi32>
    %25 = arith.cmpi eq, %13, %24 : vector<8x8xi32>
    %26 = vector.extract_strided_slice %10 {offsets = [0, 0, 1], sizes = [2, 8, 1], strides = [1, 1, 1]} : vector<2x8x9xf32> to vector<2x8x1xf32>
    %cst_15 = arith.constant 0.000000e+00 : f32
    %27 = vector.shape_cast %25 : vector<8x8xi1> to vector<1x8x8xi1>
    %28 = vector.broadcast %27 : vector<1x8x8xi1> to vector<2x8x8xi1>
    %29 = vector.shape_cast %26 : vector<2x8x1xf32> to vector<2x8x1xf32>
    %30 = vector.broadcast %29 : vector<2x8x1xf32> to vector<2x8x8xf32>
    %31 = vector.broadcast %cst_15 : f32 to vector<2x8x8xf32>
    %32 = arith.select %28, %30, %31 : vector<2x8x8xi1>, vector<2x8x8xf32>
    %33 = arith.addf %23, %32 : vector<2x8x8xf32>
    %c-2_i32 = arith.constant -2 : i32
    %34 = vector.broadcast %c-2_i32 : i32 to vector<8x8xi32>
    %35 = arith.cmpi eq, %13, %34 : vector<8x8xi32>
    %36 = vector.extract_strided_slice %10 {offsets = [0, 0, 2], sizes = [2, 8, 1], strides = [1, 1, 1]} : vector<2x8x9xf32> to vector<2x8x1xf32>
    %cst_16 = arith.constant 0.000000e+00 : f32
    %37 = vector.shape_cast %35 : vector<8x8xi1> to vector<1x8x8xi1>
    %38 = vector.broadcast %37 : vector<1x8x8xi1> to vector<2x8x8xi1>
    %39 = vector.shape_cast %36 : vector<2x8x1xf32> to vector<2x8x1xf32>
    %40 = vector.broadcast %39 : vector<2x8x1xf32> to vector<2x8x8xf32>
    %41 = vector.broadcast %cst_16 : f32 to vector<2x8x8xf32>
    %42 = arith.select %38, %40, %41 : vector<2x8x8xi1>, vector<2x8x8xf32>
    %43 = arith.addf %33, %42 : vector<2x8x8xf32>
    %c-1_i32 = arith.constant -1 : i32
    %44 = vector.broadcast %c-1_i32 : i32 to vector<8x8xi32>
    %45 = arith.cmpi eq, %13, %44 : vector<8x8xi32>
    %46 = vector.extract_strided_slice %10 {offsets = [0, 0, 3], sizes = [2, 8, 1], strides = [1, 1, 1]} : vector<2x8x9xf32> to vector<2x8x1xf32>
    %cst_17 = arith.constant 0.000000e+00 : f32
    %47 = vector.shape_cast %45 : vector<8x8xi1> to vector<1x8x8xi1>
    %48 = vector.broadcast %47 : vector<1x8x8xi1> to vector<2x8x8xi1>
    %49 = vector.shape_cast %46 : vector<2x8x1xf32> to vector<2x8x1xf32>
    %50 = vector.broadcast %49 : vector<2x8x1xf32> to vector<2x8x8xf32>
    %51 = vector.broadcast %cst_17 : f32 to vector<2x8x8xf32>
    %52 = arith.select %48, %50, %51 : vector<2x8x8xi1>, vector<2x8x8xf32>
    %53 = arith.addf %43, %52 : vector<2x8x8xf32>
    %c0_i32 = arith.constant 0 : i32
    %54 = vector.broadcast %c0_i32 : i32 to vector<8x8xi32>
    %55 = arith.cmpi eq, %13, %54 : vector<8x8xi32>
    %56 = vector.extract_strided_slice %10 {offsets = [0, 0, 4], sizes = [2, 8, 1], strides = [1, 1, 1]} : vector<2x8x9xf32> to vector<2x8x1xf32>
    %cst_18 = arith.constant 0.000000e+00 : f32
    %57 = vector.shape_cast %55 : vector<8x8xi1> to vector<1x8x8xi1>
    %58 = vector.broadcast %57 : vector<1x8x8xi1> to vector<2x8x8xi1>
    %59 = vector.shape_cast %56 : vector<2x8x1xf32> to vector<2x8x1xf32>
    %60 = vector.broadcast %59 : vector<2x8x1xf32> to vector<2x8x8xf32>
    %61 = vector.broadcast %cst_18 : f32 to vector<2x8x8xf32>
    %62 = arith.select %58, %60, %61 : vector<2x8x8xi1>, vector<2x8x8xf32>
    %63 = arith.addf %53, %62 : vector<2x8x8xf32>
    %c1_i32 = arith.constant 1 : i32
    %64 = vector.broadcast %c1_i32 : i32 to vector<8x8xi32>
    %65 = arith.cmpi eq, %13, %64 : vector<8x8xi32>
    %66 = vector.extract_strided_slice %10 {offsets = [0, 0, 5], sizes = [2, 8, 1], strides = [1, 1, 1]} : vector<2x8x9xf32> to vector<2x8x1xf32>
    %cst_19 = arith.constant 0.000000e+00 : f32
    %67 = vector.shape_cast %65 : vector<8x8xi1> to vector<1x8x8xi1>
    %68 = vector.broadcast %67 : vector<1x8x8xi1> to vector<2x8x8xi1>
    %69 = vector.shape_cast %66 : vector<2x8x1xf32> to vector<2x8x1xf32>
    %70 = vector.broadcast %69 : vector<2x8x1xf32> to vector<2x8x8xf32>
    %71 = vector.broadcast %cst_19 : f32 to vector<2x8x8xf32>
    %72 = arith.select %68, %70, %71 : vector<2x8x8xi1>, vector<2x8x8xf32>
    %73 = arith.addf %63, %72 : vector<2x8x8xf32>
    %c2_i32 = arith.constant 2 : i32
    %74 = vector.broadcast %c2_i32 : i32 to vector<8x8xi32>
    %75 = arith.cmpi eq, %13, %74 : vector<8x8xi32>
    %76 = vector.extract_strided_slice %10 {offsets = [0, 0, 6], sizes = [2, 8, 1], strides = [1, 1, 1]} : vector<2x8x9xf32> to vector<2x8x1xf32>
    %cst_20 = arith.constant 0.000000e+00 : f32
    %77 = vector.shape_cast %75 : vector<8x8xi1> to vector<1x8x8xi1>
    %78 = vector.broadcast %77 : vector<1x8x8xi1> to vector<2x8x8xi1>
    %79 = vector.shape_cast %76 : vector<2x8x1xf32> to vector<2x8x1xf32>
    %80 = vector.broadcast %79 : vector<2x8x1xf32> to vector<2x8x8xf32>
    %81 = vector.broadcast %cst_20 : f32 to vector<2x8x8xf32>
    %82 = arith.select %78, %80, %81 : vector<2x8x8xi1>, vector<2x8x8xf32>
    %83 = arith.addf %73, %82 : vector<2x8x8xf32>
    %c3_i32 = arith.constant 3 : i32
    %84 = vector.broadcast %c3_i32 : i32 to vector<8x8xi32>
    %85 = arith.cmpi eq, %13, %84 : vector<8x8xi32>
    %86 = vector.extract_strided_slice %10 {offsets = [0, 0, 7], sizes = [2, 8, 1], strides = [1, 1, 1]} : vector<2x8x9xf32> to vector<2x8x1xf32>
    %cst_21 = arith.constant 0.000000e+00 : f32
    %87 = vector.shape_cast %85 : vector<8x8xi1> to vector<1x8x8xi1>
    %88 = vector.broadcast %87 : vector<1x8x8xi1> to vector<2x8x8xi1>
    %89 = vector.shape_cast %86 : vector<2x8x1xf32> to vector<2x8x1xf32>
    %90 = vector.broadcast %89 : vector<2x8x1xf32> to vector<2x8x8xf32>
    %91 = vector.broadcast %cst_21 : f32 to vector<2x8x8xf32>
    %92 = arith.select %88, %90, %91 : vector<2x8x8xi1>, vector<2x8x8xf32>
    %93 = arith.addf %83, %92 : vector<2x8x8xf32>
    %c4_i32 = arith.constant 4 : i32
    %94 = vector.broadcast %c4_i32 : i32 to vector<8x8xi32>
    %95 = arith.cmpi eq, %13, %94 : vector<8x8xi32>
    %96 = vector.extract_strided_slice %10 {offsets = [0, 0, 8], sizes = [2, 8, 1], strides = [1, 1, 1]} : vector<2x8x9xf32> to vector<2x8x1xf32>
    %cst_22 = arith.constant 0.000000e+00 : f32
    %97 = vector.shape_cast %95 : vector<8x8xi1> to vector<1x8x8xi1>
    %98 = vector.broadcast %97 : vector<1x8x8xi1> to vector<2x8x8xi1>
    %99 = vector.shape_cast %96 : vector<2x8x1xf32> to vector<2x8x1xf32>
    %100 = vector.broadcast %99 : vector<2x8x1xf32> to vector<2x8x8xf32>
    %101 = vector.broadcast %cst_22 : f32 to vector<2x8x8xf32>
    %102 = arith.select %98, %100, %101 : vector<2x8x8xi1>, vector<2x8x8xf32>
    %103 = arith.addf %93, %102 : vector<2x8x8xf32>
    %104 = vector.broadcast %1 : i32 to vector<8x8xi32>
    %105 = arith.cmpi slt, %11, %104 : vector<8x8xi32>
    %106 = vector.broadcast %1 : i32 to vector<8x8xi32>
    %107 = arith.cmpi slt, %12, %106 : vector<8x8xi32>
    %108 = arith.andi %105, %107 : vector<8x8xi1>
    %cst_23 = arith.constant -1.000000e+04 : f32
    %109 = vector.shape_cast %108 : vector<8x8xi1> to vector<1x8x8xi1>
    %110 = vector.broadcast %109 : vector<1x8x8xi1> to vector<2x8x8xi1>
    %111 = vector.broadcast %cst_23 : f32 to vector<2x8x8xf32>
    %112 = arith.select %110, %103, %111 : vector<2x8x8xi1>, vector<2x8x8xf32>
    %cst_24 = arith.constant dense<0xFF800000> : vector<2x8xf32>
    %113 = vector.multi_reduction <maximumf>, %112, %cst_24 [2] : vector<2x8x8xf32> to vector<2x8xf32>
    %114 = vector.shape_cast %113 : vector<2x8xf32> to vector<2x8x1xf32>
    %115 = vector.broadcast %114 : vector<2x8x1xf32> to vector<2x8x8xf32>
    %116 = arith.subf %112, %115 : vector<2x8x8xf32>
    %117 = math.exp %116 : vector<2x8x8xf32>
    %cst_25 = arith.constant dense<0.000000e+00> : vector<2x8xf32>
    %118 = vector.multi_reduction <add>, %117, %cst_25 [2] : vector<2x8x8xf32> to vector<2x8xf32>
    %119 = vector.shape_cast %118 : vector<2x8xf32> to vector<2x8x1xf32>
    %120 = vector.broadcast %119 : vector<2x8x1xf32> to vector<2x8x8xf32>
    %121 = arith.divf %117, %120 : vector<2x8x8xf32>
    %122 = arith.truncf %121 : vector<2x8x8xf32> to vector<2x8x8xbf16>
    %cst_26 = arith.constant dense<0.000000e+00> : vector<2x8x16xf32>
    %123 = tpu.matmul %122, %7, %cst_26 {dimension_numbers = #tpu.dot_dimension_numbers<[2], [1], [1], [2], [0, 0, 0, 1, 1, 2], [0], [0]>} : vector<2x8x8xbf16>, vector<2x8x16xbf16>, vector<2x8x16xf32> -> vector<2x8x16xf32>
    %c0_27 = arith.constant 0 : index
    %c0_28 = arith.constant 0 : index
    %124 = vector.load %arg6[%c0_27, %c0_28] : memref<9x16xf32, #tpu.memory_space<vmem>>, vector<9x16xf32>
    %c-4_i32_29 = arith.constant -4 : i32
    %125 = vector.broadcast %c-4_i32_29 : i32 to vector<8x8xi32>
    %126 = arith.cmpi eq, %13, %125 : vector<8x8xi32>
    %cst_30 = arith.constant 0.000000e+00 : f32
    %127 = vector.shape_cast %126 : vector<8x8xi1> to vector<1x8x8xi1>
    %128 = vector.broadcast %127 : vector<1x8x8xi1> to vector<2x8x8xi1>
    %129 = vector.broadcast %cst_30 : f32 to vector<2x8x8xf32>
    %130 = arith.select %128, %121, %129 : vector<2x8x8xi1>, vector<2x8x8xf32>
    %cst_31 = arith.constant dense<0.000000e+00> : vector<2x8xf32>
    %131 = vector.multi_reduction <add>, %130, %cst_31 [2] : vector<2x8x8xf32> to vector<2x8xf32>
    %132 = vector.shape_cast %131 : vector<2x8xf32> to vector<2x8x1xf32>
    %133 = vector.extract_strided_slice %124 {offsets = [0, 0], sizes = [1, 16], strides = [1, 1]} : vector<9x16xf32> to vector<1x16xf32>
    %134 = vector.shape_cast %133 : vector<1x16xf32> to vector<1x1x16xf32>
    %135 = vector.broadcast %132 : vector<2x8x1xf32> to vector<2x8x16xf32>
    %136 = vector.broadcast %134 : vector<1x1x16xf32> to vector<2x8x16xf32>
    %137 = arith.mulf %135, %136 : vector<2x8x16xf32>
    %138 = arith.addf %123, %137 : vector<2x8x16xf32>
    %c-3_i32_32 = arith.constant -3 : i32
    %139 = vector.broadcast %c-3_i32_32 : i32 to vector<8x8xi32>
    %140 = arith.cmpi eq, %13, %139 : vector<8x8xi32>
    %cst_33 = arith.constant 0.000000e+00 : f32
    %141 = vector.shape_cast %140 : vector<8x8xi1> to vector<1x8x8xi1>
    %142 = vector.broadcast %141 : vector<1x8x8xi1> to vector<2x8x8xi1>
    %143 = vector.broadcast %cst_33 : f32 to vector<2x8x8xf32>
    %144 = arith.select %142, %121, %143 : vector<2x8x8xi1>, vector<2x8x8xf32>
    %cst_34 = arith.constant dense<0.000000e+00> : vector<2x8xf32>
    %145 = vector.multi_reduction <add>, %144, %cst_34 [2] : vector<2x8x8xf32> to vector<2x8xf32>
    %146 = vector.shape_cast %145 : vector<2x8xf32> to vector<2x8x1xf32>
    %147 = vector.extract_strided_slice %124 {offsets = [1, 0], sizes = [1, 16], strides = [1, 1]} : vector<9x16xf32> to vector<1x16xf32>
    %148 = vector.shape_cast %147 : vector<1x16xf32> to vector<1x1x16xf32>
    %149 = vector.broadcast %146 : vector<2x8x1xf32> to vector<2x8x16xf32>
    %150 = vector.broadcast %148 : vector<1x1x16xf32> to vector<2x8x16xf32>
    %151 = arith.mulf %149, %150 : vector<2x8x16xf32>
    %152 = arith.addf %138, %151 : vector<2x8x16xf32>
    %c-2_i32_35 = arith.constant -2 : i32
    %153 = vector.broadcast %c-2_i32_35 : i32 to vector<8x8xi32>
    %154 = arith.cmpi eq, %13, %153 : vector<8x8xi32>
    %cst_36 = arith.constant 0.000000e+00 : f32
    %155 = vector.shape_cast %154 : vector<8x8xi1> to vector<1x8x8xi1>
    %156 = vector.broadcast %155 : vector<1x8x8xi1> to vector<2x8x8xi1>
    %157 = vector.broadcast %cst_36 : f32 to vector<2x8x8xf32>
    %158 = arith.select %156, %121, %157 : vector<2x8x8xi1>, vector<2x8x8xf32>
    %cst_37 = arith.constant dense<0.000000e+00> : vector<2x8xf32>
    %159 = vector.multi_reduction <add>, %158, %cst_37 [2] : vector<2x8x8xf32> to vector<2x8xf32>
    %160 = vector.shape_cast %159 : vector<2x8xf32> to vector<2x8x1xf32>
    %161 = vector.extract_strided_slice %124 {offsets = [2, 0], sizes = [1, 16], strides = [1, 1]} : vector<9x16xf32> to vector<1x16xf32>
    %162 = vector.shape_cast %161 : vector<1x16xf32> to vector<1x1x16xf32>
    %163 = vector.broadcast %160 : vector<2x8x1xf32> to vector<2x8x16xf32>
    %164 = vector.broadcast %162 : vector<1x1x16xf32> to vector<2x8x16xf32>
    %165 = arith.mulf %163, %164 : vector<2x8x16xf32>
    %166 = arith.addf %152, %165 : vector<2x8x16xf32>
    %c-1_i32_38 = arith.constant -1 : i32
    %167 = vector.broadcast %c-1_i32_38 : i32 to vector<8x8xi32>
    %168 = arith.cmpi eq, %13, %167 : vector<8x8xi32>
    %cst_39 = arith.constant 0.000000e+00 : f32
    %169 = vector.shape_cast %168 : vector<8x8xi1> to vector<1x8x8xi1>
    %170 = vector.broadcast %169 : vector<1x8x8xi1> to vector<2x8x8xi1>
    %171 = vector.broadcast %cst_39 : f32 to vector<2x8x8xf32>
    %172 = arith.select %170, %121, %171 : vector<2x8x8xi1>, vector<2x8x8xf32>
    %cst_40 = arith.constant dense<0.000000e+00> : vector<2x8xf32>
    %173 = vector.multi_reduction <add>, %172, %cst_40 [2] : vector<2x8x8xf32> to vector<2x8xf32>
    %174 = vector.shape_cast %173 : vector<2x8xf32> to vector<2x8x1xf32>
    %175 = vector.extract_strided_slice %124 {offsets = [3, 0], sizes = [1, 16], strides = [1, 1]} : vector<9x16xf32> to vector<1x16xf32>
    %176 = vector.shape_cast %175 : vector<1x16xf32> to vector<1x1x16xf32>
    %177 = vector.broadcast %174 : vector<2x8x1xf32> to vector<2x8x16xf32>
    %178 = vector.broadcast %176 : vector<1x1x16xf32> to vector<2x8x16xf32>
    %179 = arith.mulf %177, %178 : vector<2x8x16xf32>
    %180 = arith.addf %166, %179 : vector<2x8x16xf32>
    %c0_i32_41 = arith.constant 0 : i32
    %181 = vector.broadcast %c0_i32_41 : i32 to vector<8x8xi32>
    %182 = arith.cmpi eq, %13, %181 : vector<8x8xi32>
    %cst_42 = arith.constant 0.000000e+00 : f32
    %183 = vector.shape_cast %182 : vector<8x8xi1> to vector<1x8x8xi1>
    %184 = vector.broadcast %183 : vector<1x8x8xi1> to vector<2x8x8xi1>
    %185 = vector.broadcast %cst_42 : f32 to vector<2x8x8xf32>
    %186 = arith.select %184, %121, %185 : vector<2x8x8xi1>, vector<2x8x8xf32>
    %cst_43 = arith.constant dense<0.000000e+00> : vector<2x8xf32>
    %187 = vector.multi_reduction <add>, %186, %cst_43 [2] : vector<2x8x8xf32> to vector<2x8xf32>
    %188 = vector.shape_cast %187 : vector<2x8xf32> to vector<2x8x1xf32>
    %189 = vector.extract_strided_slice %124 {offsets = [4, 0], sizes = [1, 16], strides = [1, 1]} : vector<9x16xf32> to vector<1x16xf32>
    %190 = vector.shape_cast %189 : vector<1x16xf32> to vector<1x1x16xf32>
    %191 = vector.broadcast %188 : vector<2x8x1xf32> to vector<2x8x16xf32>
    %192 = vector.broadcast %190 : vector<1x1x16xf32> to vector<2x8x16xf32>
    %193 = arith.mulf %191, %192 : vector<2x8x16xf32>
    %194 = arith.addf %180, %193 : vector<2x8x16xf32>
    %c1_i32_44 = arith.constant 1 : i32
    %195 = vector.broadcast %c1_i32_44 : i32 to vector<8x8xi32>
    %196 = arith.cmpi eq, %13, %195 : vector<8x8xi32>
    %cst_45 = arith.constant 0.000000e+00 : f32
    %197 = vector.shape_cast %196 : vector<8x8xi1> to vector<1x8x8xi1>
    %198 = vector.broadcast %197 : vector<1x8x8xi1> to vector<2x8x8xi1>
    %199 = vector.broadcast %cst_45 : f32 to vector<2x8x8xf32>
    %200 = arith.select %198, %121, %199 : vector<2x8x8xi1>, vector<2x8x8xf32>
    %cst_46 = arith.constant dense<0.000000e+00> : vector<2x8xf32>
    %201 = vector.multi_reduction <add>, %200, %cst_46 [2] : vector<2x8x8xf32> to vector<2x8xf32>
    %202 = vector.shape_cast %201 : vector<2x8xf32> to vector<2x8x1xf32>
    %203 = vector.extract_strided_slice %124 {offsets = [5, 0], sizes = [1, 16], strides = [1, 1]} : vector<9x16xf32> to vector<1x16xf32>
    %204 = vector.shape_cast %203 : vector<1x16xf32> to vector<1x1x16xf32>
    %205 = vector.broadcast %202 : vector<2x8x1xf32> to vector<2x8x16xf32>
    %206 = vector.broadcast %204 : vector<1x1x16xf32> to vector<2x8x16xf32>
    %207 = arith.mulf %205, %206 : vector<2x8x16xf32>
    %208 = arith.addf %194, %207 : vector<2x8x16xf32>
    %c2_i32_47 = arith.constant 2 : i32
    %209 = vector.broadcast %c2_i32_47 : i32 to vector<8x8xi32>
    %210 = arith.cmpi eq, %13, %209 : vector<8x8xi32>
    %cst_48 = arith.constant 0.000000e+00 : f32
    %211 = vector.shape_cast %210 : vector<8x8xi1> to vector<1x8x8xi1>
    %212 = vector.broadcast %211 : vector<1x8x8xi1> to vector<2x8x8xi1>
    %213 = vector.broadcast %cst_48 : f32 to vector<2x8x8xf32>
    %214 = arith.select %212, %121, %213 : vector<2x8x8xi1>, vector<2x8x8xf32>
    %cst_49 = arith.constant dense<0.000000e+00> : vector<2x8xf32>
    %215 = vector.multi_reduction <add>, %214, %cst_49 [2] : vector<2x8x8xf32> to vector<2x8xf32>
    %216 = vector.shape_cast %215 : vector<2x8xf32> to vector<2x8x1xf32>
    %217 = vector.extract_strided_slice %124 {offsets = [6, 0], sizes = [1, 16], strides = [1, 1]} : vector<9x16xf32> to vector<1x16xf32>
    %218 = vector.shape_cast %217 : vector<1x16xf32> to vector<1x1x16xf32>
    %219 = vector.broadcast %216 : vector<2x8x1xf32> to vector<2x8x16xf32>
    %220 = vector.broadcast %218 : vector<1x1x16xf32> to vector<2x8x16xf32>
    %221 = arith.mulf %219, %220 : vector<2x8x16xf32>
    %222 = arith.addf %208, %221 : vector<2x8x16xf32>
    %c3_i32_50 = arith.constant 3 : i32
    %223 = vector.broadcast %c3_i32_50 : i32 to vector<8x8xi32>
    %224 = arith.cmpi eq, %13, %223 : vector<8x8xi32>
    %cst_51 = arith.constant 0.000000e+00 : f32
    %225 = vector.shape_cast %224 : vector<8x8xi1> to vector<1x8x8xi1>
    %226 = vector.broadcast %225 : vector<1x8x8xi1> to vector<2x8x8xi1>
    %227 = vector.broadcast %cst_51 : f32 to vector<2x8x8xf32>
    %228 = arith.select %226, %121, %227 : vector<2x8x8xi1>, vector<2x8x8xf32>
    %cst_52 = arith.constant dense<0.000000e+00> : vector<2x8xf32>
    %229 = vector.multi_reduction <add>, %228, %cst_52 [2] : vector<2x8x8xf32> to vector<2x8xf32>
    %230 = vector.shape_cast %229 : vector<2x8xf32> to vector<2x8x1xf32>
    %231 = vector.extract_strided_slice %124 {offsets = [7, 0], sizes = [1, 16], strides = [1, 1]} : vector<9x16xf32> to vector<1x16xf32>
    %232 = vector.shape_cast %231 : vector<1x16xf32> to vector<1x1x16xf32>
    %233 = vector.broadcast %230 : vector<2x8x1xf32> to vector<2x8x16xf32>
    %234 = vector.broadcast %232 : vector<1x1x16xf32> to vector<2x8x16xf32>
    %235 = arith.mulf %233, %234 : vector<2x8x16xf32>
    %236 = arith.addf %222, %235 : vector<2x8x16xf32>
    %c4_i32_53 = arith.constant 4 : i32
    %237 = vector.broadcast %c4_i32_53 : i32 to vector<8x8xi32>
    %238 = arith.cmpi eq, %13, %237 : vector<8x8xi32>
    %cst_54 = arith.constant 0.000000e+00 : f32
    %239 = vector.shape_cast %238 : vector<8x8xi1> to vector<1x8x8xi1>
    %240 = vector.broadcast %239 : vector<1x8x8xi1> to vector<2x8x8xi1>
    %241 = vector.broadcast %cst_54 : f32 to vector<2x8x8xf32>
    %242 = arith.select %240, %121, %241 : vector<2x8x8xi1>, vector<2x8x8xf32>
    %cst_55 = arith.constant dense<0.000000e+00> : vector<2x8xf32>
    %243 = vector.multi_reduction <add>, %242, %cst_55 [2] : vector<2x8x8xf32> to vector<2x8xf32>
    %244 = vector.shape_cast %243 : vector<2x8xf32> to vector<2x8x1xf32>
    %245 = vector.extract_strided_slice %124 {offsets = [8, 0], sizes = [1, 16], strides = [1, 1]} : vector<9x16xf32> to vector<1x16xf32>
    %246 = vector.shape_cast %245 : vector<1x16xf32> to vector<1x1x16xf32>
    %247 = vector.broadcast %244 : vector<2x8x1xf32> to vector<2x8x16xf32>
    %248 = vector.broadcast %246 : vector<1x1x16xf32> to vector<2x8x16xf32>
    %249 = arith.mulf %247, %248 : vector<2x8x16xf32>
    %250 = arith.addf %236, %249 : vector<2x8x16xf32>
    %251 = arith.truncf %250 : vector<2x8x16xf32> to vector<2x8x16xbf16>
    %c0_56 = arith.constant 0 : index
    %c0_57 = arith.constant 0 : index
    %c0_58 = arith.constant 0 : index
    %c0_59 = arith.constant 0 : index
    %252 = vector.load %arg7[%c0_56, %c0_57, %c0_58, %c0_59] : memref<1x2x8x16xbf16, #tpu.memory_space<vmem>>, vector<1x2x8x16xbf16>
    %253 = vector.shape_cast %252 : vector<1x2x8x16xbf16> to vector<2x8x16xbf16>
    %254 = vector.shape_cast %251 : vector<2x8x16xbf16> to vector<1x2x8x16xbf16>
    tpu.vector_store %arg7[%c0_56, %c0_57, %c0_58, %c0_59], %254 {strides = array<i32>} : memref<1x2x8x16xbf16, #tpu.memory_space<vmem>>, vector<1x2x8x16xbf16>,
    return
  }
  func.func @transform_0(%arg0: i32, %arg1: memref<2xi32, #tpu.memory_space<smem>>) -> (i32, i32, i32, i32) {
    %c0_i32 = arith.constant 0 : i32
    %c0_i32_0 = arith.constant 0 : i32
    %c0_i32_1 = arith.constant 0 : i32
    %c0_i32_2 = arith.constant 0 : i32
    return %arg0, %c0_i32, %c0_i32_0, %c0_i32_1 : i32, i32, i32, i32
  }
  func.func @transform_1(%arg0: i32, %arg1: memref<2xi32, #tpu.memory_space<smem>>) -> (i32, i32, i32, i32) {
    %c0_i32 = arith.constant 0 : i32
    %c0_i32_0 = arith.constant 0 : i32
    %c0_i32_1 = arith.constant 0 : i32
    %c0_i32_2 = arith.constant 0 : i32
    return %arg0, %c0_i32, %c0_i32_0, %c0_i32_1 : i32, i32, i32, i32
  }
  func.func @transform_2(%arg0: i32, %arg1: memref<2xi32, #tpu.memory_space<smem>>) -> (i32, i32, i32, i32) {
    %c0_i32 = arith.constant 0 : i32
    %c0_i32_0 = arith.constant 0 : i32
    %c0_i32_1 = arith.constant 0 : i32
    %c0_i32_2 = arith.constant 0 : i32
    return %arg0, %c0_i32, %c0_i32_0, %c0_i32_1 : i32, i32, i32, i32
  }
  func.func @transform_3(%arg0: i32, %arg1: memref<2xi32, #tpu.memory_space<smem>>) -> (i32, i32) {
    %c0_i32 = arith.constant 0 : i32
    %c0_i32_0 = arith.constant 0 : i32
    %c0_i32_1 = arith.constant 0 : i32
    return %c0_i32, %c0_i32_0 : i32, i32
  }
  func.func @transform_4(%arg0: i32, %arg1: memref<2xi32, #tpu.memory_space<smem>>) -> (i32, i32) {
    %c0_i32 = arith.constant 0 : i32
    %c0_i32_0 = arith.constant 0 : i32
    %c0_i32_1 = arith.constant 0 : i32
    return %c0_i32, %c0_i32_0 : i32, i32
  }
  func.func @transform_5(%arg0: i32, %arg1: memref<2xi32, #tpu.memory_space<smem>>) -> (i32, i32, i32, i32) {
    %c0_i32 = arith.constant 0 : i32
    %c0_i32_0 = arith.constant 0 : i32
    %c0_i32_1 = arith.constant 0 : i32
    %c0_i32_2 = arith.constant 0 : i32
    return %arg0, %c0_i32, %c0_i32_0, %c0_i32_1 : i32, i32, i32, i32
  }
}

module attributes {stable_mosaic.version = 11 : i64} {
  func.func @_proj_res_ln_kernel(%arg0: i32, %arg1: memref<16x32xbf16, #tpu.memory_space<vmem>>, %arg2: memref<32x32xbf16, #tpu.memory_space<vmem>>, %arg3: memref<1x32xf32, #tpu.memory_space<vmem>>, %arg4: memref<16x32xf32, #tpu.memory_space<vmem>>, %arg5: memref<1x32xf32, #tpu.memory_space<vmem>>, %arg6: memref<1x32xf32, #tpu.memory_space<vmem>>, %arg7: memref<16x32xf32, #tpu.memory_space<vmem>>) attributes {dimension_semantics = [#tpu.dimension_semantics<parallel>], iteration_bounds = array<i64: 1>, scalar_prefetch = 0 : i64, scratch_operands = 0 : i64, tpu.core_type = #tpu.core_type<tc>, window_params = [{transform_indices = @transform_0, window_bounds = array<i64: 16, 32>}, {pipeline_mode = #tpu.pipeline_mode<synchronous>, transform_indices = @transform_1, window_bounds = array<i64: 32, 32>}, {pipeline_mode = #tpu.pipeline_mode<synchronous>, transform_indices = @transform_2, window_bounds = array<i64: 1, 32>}, {transform_indices = @transform_3, window_bounds = array<i64: 16, 32>}, {pipeline_mode = #tpu.pipeline_mode<synchronous>, transform_indices = @transform_4, window_bounds = array<i64: 1, 32>}, {pipeline_mode = #tpu.pipeline_mode<synchronous>, transform_indices = @transform_5, window_bounds = array<i64: 1, 32>}, {transform_indices = @transform_6, window_bounds = array<i64: 16, 32>}]} {
    %c0 = arith.constant 0 : index
    %c0_0 = arith.constant 0 : index
    %0 = vector.load %arg1[%c0, %c0_0] : memref<16x32xbf16, #tpu.memory_space<vmem>>, vector<16x32xbf16>
    %c0_1 = arith.constant 0 : index
    %c0_2 = arith.constant 0 : index
    %1 = vector.load %arg2[%c0_1, %c0_2] : memref<32x32xbf16, #tpu.memory_space<vmem>>, vector<32x32xbf16>
    %cst = arith.constant dense<0.000000e+00> : vector<16x32xf32>
    %2 = tpu.matmul %0, %1, %cst {dimension_numbers = #tpu.dot_dimension_numbers<[1], [0], [0], [1], [0, 0, 1, 1], [], []>} : vector<16x32xbf16>, vector<32x32xbf16>, vector<16x32xf32> -> vector<16x32xf32>
    %c0_3 = arith.constant 0 : index
    %c0_4 = arith.constant 0 : index
    %3 = vector.load %arg3[%c0_3, %c0_4] : memref<1x32xf32, #tpu.memory_space<vmem>>, vector<1x32xf32>
    %4 = vector.broadcast %3 : vector<1x32xf32> to vector<16x32xf32>
    %5 = arith.addf %2, %4 : vector<16x32xf32>
    %c0_5 = arith.constant 0 : index
    %c0_6 = arith.constant 0 : index
    %6 = vector.load %arg4[%c0_5, %c0_6] : memref<16x32xf32, #tpu.memory_space<vmem>>, vector<16x32xf32>
    %7 = arith.addf %6, %5 : vector<16x32xf32>
    %cst_7 = arith.constant dense<0.000000e+00> : vector<16xf32>
    %8 = vector.multi_reduction <add>, %7, %cst_7 [1] : vector<16x32xf32> to vector<16xf32>
    %9 = vector.shape_cast %8 : vector<16xf32> to vector<16x1xf32>
    %cst_8 = arith.constant 3.200000e+01 : f32
    %10 = vector.broadcast %cst_8 : f32 to vector<16x1xf32>
    %11 = arith.divf %9, %10 : vector<16x1xf32>
    %12 = vector.broadcast %11 : vector<16x1xf32> to vector<16x32xf32>
    %13 = arith.subf %7, %12 : vector<16x32xf32>
    %14 = arith.mulf %13, %13 : vector<16x32xf32>
    %cst_9 = arith.constant dense<0.000000e+00> : vector<16xf32>
    %15 = vector.multi_reduction <add>, %14, %cst_9 [1] : vector<16x32xf32> to vector<16xf32>
    %16 = vector.shape_cast %15 : vector<16xf32> to vector<16x1xf32>
    %cst_10 = arith.constant 3.200000e+01 : f32
    %17 = vector.broadcast %cst_10 : f32 to vector<16x1xf32>
    %18 = arith.divf %16, %17 : vector<16x1xf32>
    %cst_11 = arith.constant 9.99999974E-6 : f32
    %19 = vector.broadcast %cst_11 : f32 to vector<16x1xf32>
    %20 = arith.addf %18, %19 : vector<16x1xf32>
    %21 = math.rsqrt %20 : vector<16x1xf32>
    %22 = vector.broadcast %21 : vector<16x1xf32> to vector<16x32xf32>
    %23 = arith.mulf %13, %22 : vector<16x32xf32>
    %c0_12 = arith.constant 0 : index
    %c0_13 = arith.constant 0 : index
    %24 = vector.load %arg5[%c0_12, %c0_13] : memref<1x32xf32, #tpu.memory_space<vmem>>, vector<1x32xf32>
    %25 = vector.broadcast %24 : vector<1x32xf32> to vector<16x32xf32>
    %26 = arith.mulf %23, %25 : vector<16x32xf32>
    %c0_14 = arith.constant 0 : index
    %c0_15 = arith.constant 0 : index
    %27 = vector.load %arg6[%c0_14, %c0_15] : memref<1x32xf32, #tpu.memory_space<vmem>>, vector<1x32xf32>
    %28 = vector.broadcast %27 : vector<1x32xf32> to vector<16x32xf32>
    %29 = arith.addf %26, %28 : vector<16x32xf32>
    %c0_16 = arith.constant 0 : index
    %c0_17 = arith.constant 0 : index
    %30 = vector.load %arg7[%c0_16, %c0_17] : memref<16x32xf32, #tpu.memory_space<vmem>>, vector<16x32xf32>
    tpu.vector_store %arg7[%c0_16, %c0_17], %29 {strides = array<i32>} : memref<16x32xf32, #tpu.memory_space<vmem>>, vector<16x32xf32>,
    return
  }
  func.func @transform_0(%arg0: i32) -> (i32, i32) {
    %c0_i32 = arith.constant 0 : i32
    %c0_i32_0 = arith.constant 0 : i32
    return %arg0, %c0_i32 : i32, i32
  }
  func.func @transform_1(%arg0: i32) -> (i32, i32) {
    %c0_i32 = arith.constant 0 : i32
    %c0_i32_0 = arith.constant 0 : i32
    %c0_i32_1 = arith.constant 0 : i32
    return %c0_i32, %c0_i32_0 : i32, i32
  }
  func.func @transform_2(%arg0: i32) -> (i32, i32) {
    %c0_i32 = arith.constant 0 : i32
    %c0_i32_0 = arith.constant 0 : i32
    %c0_i32_1 = arith.constant 0 : i32
    return %c0_i32, %c0_i32_0 : i32, i32
  }
  func.func @transform_3(%arg0: i32) -> (i32, i32) {
    %c0_i32 = arith.constant 0 : i32
    %c0_i32_0 = arith.constant 0 : i32
    return %arg0, %c0_i32 : i32, i32
  }
  func.func @transform_4(%arg0: i32) -> (i32, i32) {
    %c0_i32 = arith.constant 0 : i32
    %c0_i32_0 = arith.constant 0 : i32
    %c0_i32_1 = arith.constant 0 : i32
    return %c0_i32, %c0_i32_0 : i32, i32
  }
  func.func @transform_5(%arg0: i32) -> (i32, i32) {
    %c0_i32 = arith.constant 0 : i32
    %c0_i32_0 = arith.constant 0 : i32
    %c0_i32_1 = arith.constant 0 : i32
    return %c0_i32, %c0_i32_0 : i32, i32
  }
  func.func @transform_6(%arg0: i32) -> (i32, i32) {
    %c0_i32 = arith.constant 0 : i32
    %c0_i32_0 = arith.constant 0 : i32
    return %arg0, %c0_i32 : i32, i32
  }
}

module attributes {stable_mosaic.version = 11 : i64} {
  func.func @_ffn_ln_kernel(%arg0: i32, %arg1: memref<2xi32, #tpu.memory_space<smem>>, %arg2: memref<1x8x32xf32, #tpu.memory_space<vmem>>, %arg3: memref<3x32x64xbf16, #tpu.memory_space<vmem>>, %arg4: memref<1x64xf32, #tpu.memory_space<vmem>>, %arg5: memref<3x64x32xbf16, #tpu.memory_space<vmem>>, %arg6: memref<1x32xf32, #tpu.memory_space<vmem>>, %arg7: memref<1x32xf32, #tpu.memory_space<vmem>>, %arg8: memref<1x32xf32, #tpu.memory_space<vmem>>, %arg9: memref<1x8x32xf32, #tpu.memory_space<vmem>>) attributes {dimension_semantics = [#tpu.dimension_semantics<parallel>], iteration_bounds = array<i64: 2>, scalar_prefetch = 1 : i64, scratch_operands = 0 : i64, tpu.core_type = #tpu.core_type<tc>, window_params = [{transform_indices = @transform_0, window_bounds = array<i64: 1, 8, 32>}, {pipeline_mode = #tpu.pipeline_mode<synchronous>, transform_indices = @transform_1, window_bounds = array<i64: 3, 32, 64>}, {pipeline_mode = #tpu.pipeline_mode<synchronous>, transform_indices = @transform_2, window_bounds = array<i64: 1, 64>}, {pipeline_mode = #tpu.pipeline_mode<synchronous>, transform_indices = @transform_3, window_bounds = array<i64: 3, 64, 32>}, {pipeline_mode = #tpu.pipeline_mode<synchronous>, transform_indices = @transform_4, window_bounds = array<i64: 1, 32>}, {pipeline_mode = #tpu.pipeline_mode<synchronous>, transform_indices = @transform_5, window_bounds = array<i64: 1, 32>}, {pipeline_mode = #tpu.pipeline_mode<synchronous>, transform_indices = @transform_6, window_bounds = array<i64: 1, 32>}, {transform_indices = @transform_7, window_bounds = array<i64: 1, 8, 32>}]} {
    %0 = arith.index_cast %arg0 : i32 to index
    %1 = memref.load %arg1[%0] : memref<2xi32, #tpu.memory_space<smem>>
    %c0 = arith.constant 0 : index
    %c0_0 = arith.constant 0 : index
    %c0_1 = arith.constant 0 : index
    %2 = vector.load %arg2[%c0, %c0_0, %c0_1] : memref<1x8x32xf32, #tpu.memory_space<vmem>>, vector<1x8x32xf32>
    %3 = vector.shape_cast %2 : vector<1x8x32xf32> to vector<8x32xf32>
    %4 = tpu.iota {dimensions = array<i32: 0>} : vector<8x1xi32>
    %cst = arith.constant 0.000000e+00 : f32
    %5 = vector.broadcast %cst : f32 to vector<8x64xf32>
    %c1_i32 = arith.constant 1 : i32
    %6 = tpu.dynamic_rotate %3 by %c1_i32 dim 0 : vector<8x32xf32>, i32 -> vector<8x32xf32>
    %c-1_i32 = arith.constant -1 : i32
    %7 = vector.broadcast %c-1_i32 : i32 to vector<8x1xi32>
    %8 = arith.addi %4, %7 : vector<8x1xi32>
    %c0_i32 = arith.constant 0 : i32
    %9 = vector.broadcast %c0_i32 : i32 to vector<8x1xi32>
    %10 = arith.cmpi sge, %8, %9 : vector<8x1xi32>
    %11 = vector.broadcast %1 : i32 to vector<8x1xi32>
    %12 = arith.cmpi slt, %8, %11 : vector<8x1xi32>
    %13 = arith.andi %10, %12 : vector<8x1xi1>
    %cst_2 = arith.constant 0.000000e+00 : f32
    %14 = vector.shape_cast %13 : vector<8x1xi1> to vector<8x1xi1>
    %15 = vector.broadcast %14 : vector<8x1xi1> to vector<8x32xi1>
    %16 = vector.broadcast %cst_2 : f32 to vector<8x32xf32>
    %17 = arith.select %15, %6, %16 : vector<8x32xi1>, vector<8x32xf32>
    %18 = arith.truncf %17 : vector<8x32xf32> to vector<8x32xbf16>
    %c0_3 = arith.constant 0 : index
    %c0_4 = arith.constant 0 : index
    %c0_5 = arith.constant 0 : index
    %19 = vector.load %arg3[%c0_3, %c0_4, %c0_5] : memref<3x32x64xbf16, #tpu.memory_space<vmem>>, vector<1x32x64xbf16>
    %20 = vector.shape_cast %19 : vector<1x32x64xbf16> to vector<32x64xbf16>
    %cst_6 = arith.constant dense<0.000000e+00> : vector<8x64xf32>
    %21 = tpu.matmul %18, %20, %cst_6 {dimension_numbers = #tpu.dot_dimension_numbers<[1], [0], [0], [1], [0, 0, 1, 1], [], []>} : vector<8x32xbf16>, vector<32x64xbf16>, vector<8x64xf32> -> vector<8x64xf32>
    %22 = arith.addf %5, %21 : vector<8x64xf32>
    %c0_i32_7 = arith.constant 0 : i32
    %23 = vector.broadcast %c0_i32_7 : i32 to vector<8x1xi32>
    %24 = arith.addi %4, %23 : vector<8x1xi32>
    %c0_i32_8 = arith.constant 0 : i32
    %25 = vector.broadcast %c0_i32_8 : i32 to vector<8x1xi32>
    %26 = arith.cmpi sge, %24, %25 : vector<8x1xi32>
    %27 = vector.broadcast %1 : i32 to vector<8x1xi32>
    %28 = arith.cmpi slt, %24, %27 : vector<8x1xi32>
    %29 = arith.andi %26, %28 : vector<8x1xi1>
    %cst_9 = arith.constant 0.000000e+00 : f32
    %30 = vector.shape_cast %29 : vector<8x1xi1> to vector<8x1xi1>
    %31 = vector.broadcast %30 : vector<8x1xi1> to vector<8x32xi1>
    %32 = vector.broadcast %cst_9 : f32 to vector<8x32xf32>
    %33 = arith.select %31, %3, %32 : vector<8x32xi1>, vector<8x32xf32>
    %34 = arith.truncf %33 : vector<8x32xf32> to vector<8x32xbf16>
    %c1 = arith.constant 1 : index
    %c0_10 = arith.constant 0 : index
    %c0_11 = arith.constant 0 : index
    %35 = vector.load %arg3[%c1, %c0_10, %c0_11] : memref<3x32x64xbf16, #tpu.memory_space<vmem>>, vector<1x32x64xbf16>
    %36 = vector.shape_cast %35 : vector<1x32x64xbf16> to vector<32x64xbf16>
    %cst_12 = arith.constant dense<0.000000e+00> : vector<8x64xf32>
    %37 = tpu.matmul %34, %36, %cst_12 {dimension_numbers = #tpu.dot_dimension_numbers<[1], [0], [0], [1], [0, 0, 1, 1], [], []>} : vector<8x32xbf16>, vector<32x64xbf16>, vector<8x64xf32> -> vector<8x64xf32>
    %38 = arith.addf %22, %37 : vector<8x64xf32>
    %c7_i32 = arith.constant 7 : i32
    %39 = tpu.dynamic_rotate %3 by %c7_i32 dim 0 : vector<8x32xf32>, i32 -> vector<8x32xf32>
    %c1_i32_13 = arith.constant 1 : i32
    %40 = vector.broadcast %c1_i32_13 : i32 to vector<8x1xi32>
    %41 = arith.addi %4, %40 : vector<8x1xi32>
    %c0_i32_14 = arith.constant 0 : i32
    %42 = vector.broadcast %c0_i32_14 : i32 to vector<8x1xi32>
    %43 = arith.cmpi sge, %41, %42 : vector<8x1xi32>
    %44 = vector.broadcast %1 : i32 to vector<8x1xi32>
    %45 = arith.cmpi slt, %41, %44 : vector<8x1xi32>
    %46 = arith.andi %43, %45 : vector<8x1xi1>
    %cst_15 = arith.constant 0.000000e+00 : f32
    %47 = vector.shape_cast %46 : vector<8x1xi1> to vector<8x1xi1>
    %48 = vector.broadcast %47 : vector<8x1xi1> to vector<8x32xi1>
    %49 = vector.broadcast %cst_15 : f32 to vector<8x32xf32>
    %50 = arith.select %48, %39, %49 : vector<8x32xi1>, vector<8x32xf32>
    %51 = arith.truncf %50 : vector<8x32xf32> to vector<8x32xbf16>
    %c2 = arith.constant 2 : index
    %c0_16 = arith.constant 0 : index
    %c0_17 = arith.constant 0 : index
    %52 = vector.load %arg3[%c2, %c0_16, %c0_17] : memref<3x32x64xbf16, #tpu.memory_space<vmem>>, vector<1x32x64xbf16>
    %53 = vector.shape_cast %52 : vector<1x32x64xbf16> to vector<32x64xbf16>
    %cst_18 = arith.constant dense<0.000000e+00> : vector<8x64xf32>
    %54 = tpu.matmul %51, %53, %cst_18 {dimension_numbers = #tpu.dot_dimension_numbers<[1], [0], [0], [1], [0, 0, 1, 1], [], []>} : vector<8x32xbf16>, vector<32x64xbf16>, vector<8x64xf32> -> vector<8x64xf32>
    %55 = arith.addf %38, %54 : vector<8x64xf32>
    %c0_19 = arith.constant 0 : index
    %c0_20 = arith.constant 0 : index
    %56 = vector.load %arg4[%c0_19, %c0_20] : memref<1x64xf32, #tpu.memory_space<vmem>>, vector<1x64xf32>
    %57 = vector.broadcast %56 : vector<1x64xf32> to vector<8x64xf32>
    %58 = arith.addf %55, %57 : vector<8x64xf32>
    %cst_21 = arith.constant 0.000000e+00 : f32
    %59 = vector.broadcast %cst_21 : f32 to vector<8x64xf32>
    %60 = arith.maximumf %58, %59 : vector<8x64xf32>
    %cst_22 = arith.constant 0.000000e+00 : f32
    %61 = vector.broadcast %cst_22 : f32 to vector<8x32xf32>
    %c1_i32_23 = arith.constant 1 : i32
    %62 = tpu.dynamic_rotate %60 by %c1_i32_23 dim 0 : vector<8x64xf32>, i32 -> vector<8x64xf32>
    %c-1_i32_24 = arith.constant -1 : i32
    %63 = vector.broadcast %c-1_i32_24 : i32 to vector<8x1xi32>
    %64 = arith.addi %4, %63 : vector<8x1xi32>
    %c0_i32_25 = arith.constant 0 : i32
    %65 = vector.broadcast %c0_i32_25 : i32 to vector<8x1xi32>
    %66 = arith.cmpi sge, %64, %65 : vector<8x1xi32>
    %67 = vector.broadcast %1 : i32 to vector<8x1xi32>
    %68 = arith.cmpi slt, %64, %67 : vector<8x1xi32>
    %69 = arith.andi %66, %68 : vector<8x1xi1>
    %cst_26 = arith.constant 0.000000e+00 : f32
    %70 = vector.shape_cast %69 : vector<8x1xi1> to vector<8x1xi1>
    %71 = vector.broadcast %70 : vector<8x1xi1> to vector<8x64xi1>
    %72 = vector.broadcast %cst_26 : f32 to vector<8x64xf32>
    %73 = arith.select %71, %62, %72 : vector<8x64xi1>, vector<8x64xf32>
    %74 = arith.truncf %73 : vector<8x64xf32> to vector<8x64xbf16>
    %c0_27 = arith.constant 0 : index
    %c0_28 = arith.constant 0 : index
    %c0_29 = arith.constant 0 : index
    %75 = vector.load %arg5[%c0_27, %c0_28, %c0_29] : memref<3x64x32xbf16, #tpu.memory_space<vmem>>, vector<1x64x32xbf16>
    %76 = vector.shape_cast %75 : vector<1x64x32xbf16> to vector<64x32xbf16>
    %cst_30 = arith.constant dense<0.000000e+00> : vector<8x32xf32>
    %77 = tpu.matmul %74, %76, %cst_30 {dimension_numbers = #tpu.dot_dimension_numbers<[1], [0], [0], [1], [0, 0, 1, 1], [], []>} : vector<8x64xbf16>, vector<64x32xbf16>, vector<8x32xf32> -> vector<8x32xf32>
    %78 = arith.addf %61, %77 : vector<8x32xf32>
    %c0_i32_31 = arith.constant 0 : i32
    %79 = vector.broadcast %c0_i32_31 : i32 to vector<8x1xi32>
    %80 = arith.addi %4, %79 : vector<8x1xi32>
    %c0_i32_32 = arith.constant 0 : i32
    %81 = vector.broadcast %c0_i32_32 : i32 to vector<8x1xi32>
    %82 = arith.cmpi sge, %80, %81 : vector<8x1xi32>
    %83 = vector.broadcast %1 : i32 to vector<8x1xi32>
    %84 = arith.cmpi slt, %80, %83 : vector<8x1xi32>
    %85 = arith.andi %82, %84 : vector<8x1xi1>
    %cst_33 = arith.constant 0.000000e+00 : f32
    %86 = vector.shape_cast %85 : vector<8x1xi1> to vector<8x1xi1>
    %87 = vector.broadcast %86 : vector<8x1xi1> to vector<8x64xi1>
    %88 = vector.broadcast %cst_33 : f32 to vector<8x64xf32>
    %89 = arith.select %87, %60, %88 : vector<8x64xi1>, vector<8x64xf32>
    %90 = arith.truncf %89 : vector<8x64xf32> to vector<8x64xbf16>
    %c1_34 = arith.constant 1 : index
    %c0_35 = arith.constant 0 : index
    %c0_36 = arith.constant 0 : index
    %91 = vector.load %arg5[%c1_34, %c0_35, %c0_36] : memref<3x64x32xbf16, #tpu.memory_space<vmem>>, vector<1x64x32xbf16>
    %92 = vector.shape_cast %91 : vector<1x64x32xbf16> to vector<64x32xbf16>
    %cst_37 = arith.constant dense<0.000000e+00> : vector<8x32xf32>
    %93 = tpu.matmul %90, %92, %cst_37 {dimension_numbers = #tpu.dot_dimension_numbers<[1], [0], [0], [1], [0, 0, 1, 1], [], []>} : vector<8x64xbf16>, vector<64x32xbf16>, vector<8x32xf32> -> vector<8x32xf32>
    %94 = arith.addf %78, %93 : vector<8x32xf32>
    %c7_i32_38 = arith.constant 7 : i32
    %95 = tpu.dynamic_rotate %60 by %c7_i32_38 dim 0 : vector<8x64xf32>, i32 -> vector<8x64xf32>
    %c1_i32_39 = arith.constant 1 : i32
    %96 = vector.broadcast %c1_i32_39 : i32 to vector<8x1xi32>
    %97 = arith.addi %4, %96 : vector<8x1xi32>
    %c0_i32_40 = arith.constant 0 : i32
    %98 = vector.broadcast %c0_i32_40 : i32 to vector<8x1xi32>
    %99 = arith.cmpi sge, %97, %98 : vector<8x1xi32>
    %100 = vector.broadcast %1 : i32 to vector<8x1xi32>
    %101 = arith.cmpi slt, %97, %100 : vector<8x1xi32>
    %102 = arith.andi %99, %101 : vector<8x1xi1>
    %cst_41 = arith.constant 0.000000e+00 : f32
    %103 = vector.shape_cast %102 : vector<8x1xi1> to vector<8x1xi1>
    %104 = vector.broadcast %103 : vector<8x1xi1> to vector<8x64xi1>
    %105 = vector.broadcast %cst_41 : f32 to vector<8x64xf32>
    %106 = arith.select %104, %95, %105 : vector<8x64xi1>, vector<8x64xf32>
    %107 = arith.truncf %106 : vector<8x64xf32> to vector<8x64xbf16>
    %c2_42 = arith.constant 2 : index
    %c0_43 = arith.constant 0 : index
    %c0_44 = arith.constant 0 : index
    %108 = vector.load %arg5[%c2_42, %c0_43, %c0_44] : memref<3x64x32xbf16, #tpu.memory_space<vmem>>, vector<1x64x32xbf16>
    %109 = vector.shape_cast %108 : vector<1x64x32xbf16> to vector<64x32xbf16>
    %cst_45 = arith.constant dense<0.000000e+00> : vector<8x32xf32>
    %110 = tpu.matmul %107, %109, %cst_45 {dimension_numbers = #tpu.dot_dimension_numbers<[1], [0], [0], [1], [0, 0, 1, 1], [], []>} : vector<8x64xbf16>, vector<64x32xbf16>, vector<8x32xf32> -> vector<8x32xf32>
    %111 = arith.addf %94, %110 : vector<8x32xf32>
    %c0_46 = arith.constant 0 : index
    %c0_47 = arith.constant 0 : index
    %112 = vector.load %arg6[%c0_46, %c0_47] : memref<1x32xf32, #tpu.memory_space<vmem>>, vector<1x32xf32>
    %113 = vector.broadcast %112 : vector<1x32xf32> to vector<8x32xf32>
    %114 = arith.addf %111, %113 : vector<8x32xf32>
    %115 = vector.broadcast %1 : i32 to vector<8x1xi32>
    %116 = arith.cmpi slt, %4, %115 : vector<8x1xi32>
    %cst_48 = arith.constant 0.000000e+00 : f32
    %117 = vector.shape_cast %116 : vector<8x1xi1> to vector<8x1xi1>
    %118 = vector.broadcast %117 : vector<8x1xi1> to vector<8x32xi1>
    %119 = vector.broadcast %cst_48 : f32 to vector<8x32xf32>
    %120 = arith.select %118, %114, %119 : vector<8x32xi1>, vector<8x32xf32>
    %121 = arith.addf %3, %120 : vector<8x32xf32>
    %cst_49 = arith.constant dense<0.000000e+00> : vector<8xf32>
    %122 = vector.multi_reduction <add>, %121, %cst_49 [1] : vector<8x32xf32> to vector<8xf32>
    %123 = vector.shape_cast %122 : vector<8xf32> to vector<8x1xf32>
    %cst_50 = arith.constant 3.200000e+01 : f32
    %124 = vector.broadcast %cst_50 : f32 to vector<8x1xf32>
    %125 = arith.divf %123, %124 : vector<8x1xf32>
    %126 = vector.broadcast %125 : vector<8x1xf32> to vector<8x32xf32>
    %127 = arith.subf %121, %126 : vector<8x32xf32>
    %128 = arith.mulf %127, %127 : vector<8x32xf32>
    %cst_51 = arith.constant dense<0.000000e+00> : vector<8xf32>
    %129 = vector.multi_reduction <add>, %128, %cst_51 [1] : vector<8x32xf32> to vector<8xf32>
    %130 = vector.shape_cast %129 : vector<8xf32> to vector<8x1xf32>
    %cst_52 = arith.constant 3.200000e+01 : f32
    %131 = vector.broadcast %cst_52 : f32 to vector<8x1xf32>
    %132 = arith.divf %130, %131 : vector<8x1xf32>
    %cst_53 = arith.constant 9.99999974E-6 : f32
    %133 = vector.broadcast %cst_53 : f32 to vector<8x1xf32>
    %134 = arith.addf %132, %133 : vector<8x1xf32>
    %135 = math.rsqrt %134 : vector<8x1xf32>
    %136 = vector.broadcast %135 : vector<8x1xf32> to vector<8x32xf32>
    %137 = arith.mulf %127, %136 : vector<8x32xf32>
    %c0_54 = arith.constant 0 : index
    %c0_55 = arith.constant 0 : index
    %138 = vector.load %arg7[%c0_54, %c0_55] : memref<1x32xf32, #tpu.memory_space<vmem>>, vector<1x32xf32>
    %139 = vector.broadcast %138 : vector<1x32xf32> to vector<8x32xf32>
    %140 = arith.mulf %137, %139 : vector<8x32xf32>
    %c0_56 = arith.constant 0 : index
    %c0_57 = arith.constant 0 : index
    %141 = vector.load %arg8[%c0_56, %c0_57] : memref<1x32xf32, #tpu.memory_space<vmem>>, vector<1x32xf32>
    %142 = vector.broadcast %141 : vector<1x32xf32> to vector<8x32xf32>
    %143 = arith.addf %140, %142 : vector<8x32xf32>
    %c0_58 = arith.constant 0 : index
    %c0_59 = arith.constant 0 : index
    %c0_60 = arith.constant 0 : index
    %144 = vector.load %arg9[%c0_58, %c0_59, %c0_60] : memref<1x8x32xf32, #tpu.memory_space<vmem>>, vector<1x8x32xf32>
    %145 = vector.shape_cast %144 : vector<1x8x32xf32> to vector<8x32xf32>
    %146 = vector.shape_cast %143 : vector<8x32xf32> to vector<1x8x32xf32>
    tpu.vector_store %arg9[%c0_58, %c0_59, %c0_60], %146 {strides = array<i32>} : memref<1x8x32xf32, #tpu.memory_space<vmem>>, vector<1x8x32xf32>,
    return
  }
  func.func @transform_0(%arg0: i32, %arg1: memref<2xi32, #tpu.memory_space<smem>>) -> (i32, i32, i32) {
    %c0_i32 = arith.constant 0 : i32
    %c0_i32_0 = arith.constant 0 : i32
    %c0_i32_1 = arith.constant 0 : i32
    return %arg0, %c0_i32, %c0_i32_0 : i32, i32, i32
  }
  func.func @transform_1(%arg0: i32, %arg1: memref<2xi32, #tpu.memory_space<smem>>) -> (i32, i32, i32) {
    %c0_i32 = arith.constant 0 : i32
    %c0_i32_0 = arith.constant 0 : i32
    %c0_i32_1 = arith.constant 0 : i32
    %c0_i32_2 = arith.constant 0 : i32
    return %c0_i32, %c0_i32_0, %c0_i32_1 : i32, i32, i32
  }
  func.func @transform_2(%arg0: i32, %arg1: memref<2xi32, #tpu.memory_space<smem>>) -> (i32, i32) {
    %c0_i32 = arith.constant 0 : i32
    %c0_i32_0 = arith.constant 0 : i32
    %c0_i32_1 = arith.constant 0 : i32
    return %c0_i32, %c0_i32_0 : i32, i32
  }
  func.func @transform_3(%arg0: i32, %arg1: memref<2xi32, #tpu.memory_space<smem>>) -> (i32, i32, i32) {
    %c0_i32 = arith.constant 0 : i32
    %c0_i32_0 = arith.constant 0 : i32
    %c0_i32_1 = arith.constant 0 : i32
    %c0_i32_2 = arith.constant 0 : i32
    return %c0_i32, %c0_i32_0, %c0_i32_1 : i32, i32, i32
  }
  func.func @transform_4(%arg0: i32, %arg1: memref<2xi32, #tpu.memory_space<smem>>) -> (i32, i32) {
    %c0_i32 = arith.constant 0 : i32
    %c0_i32_0 = arith.constant 0 : i32
    %c0_i32_1 = arith.constant 0 : i32
    return %c0_i32, %c0_i32_0 : i32, i32
  }
  func.func @transform_5(%arg0: i32, %arg1: memref<2xi32, #tpu.memory_space<smem>>) -> (i32, i32) {
    %c0_i32 = arith.constant 0 : i32
    %c0_i32_0 = arith.constant 0 : i32
    %c0_i32_1 = arith.constant 0 : i32
    return %c0_i32, %c0_i32_0 : i32, i32
  }
  func.func @transform_6(%arg0: i32, %arg1: memref<2xi32, #tpu.memory_space<smem>>) -> (i32, i32) {
    %c0_i32 = arith.constant 0 : i32
    %c0_i32_0 = arith.constant 0 : i32
    %c0_i32_1 = arith.constant 0 : i32
    return %c0_i32, %c0_i32_0 : i32, i32
  }
  func.func @transform_7(%arg0: i32, %arg1: memref<2xi32, #tpu.memory_space<smem>>) -> (i32, i32, i32) {
    %c0_i32 = arith.constant 0 : i32
    %c0_i32_0 = arith.constant 0 : i32
    %c0_i32_1 = arith.constant 0 : i32
    return %arg0, %c0_i32, %c0_i32_0 : i32, i32, i32
  }
}

</mosaic_0001>

<llo_original>
// kernel: forward.10
$region0: #{forward.10}
  #allocation0 [shape = 'u32[]', space=smem, size = 0x4, offset = 0x4, fixed_abs, tag = 'smem constant byte address 0x4 - core index']
  #allocation1 [shape = 'u32[144,128]{1,0:T(1,128)}', space=vmem, size = 0x12000, scoped, tag = 'internal scratch']
  %s0 = inlined_call_operand.vmem [shape: bf16[16,32], index: 0, kind: input, shape index: {}]
  %s1 = inlined_call_operand.vmem [shape: bf16[32,32], index: 1, kind: input, shape index: {}]
  %s2 = inlined_call_operand.vmem [shape: f32[1,32], index: 2, kind: input, shape index: {}]
  %s3 = inlined_call_operand.vmem [shape: f32[16,32], index: 3, kind: input, shape index: {}]
  %s4 = inlined_call_operand.vmem [shape: f32[1,32], index: 4, kind: input, shape index: {}]
  %s5 = inlined_call_operand.vmem [shape: f32[1,32], index: 5, kind: input, shape index: {}]
  %s6 = inlined_call_operand.vmem [shape: f32[16,32], index: 6, kind: output, shape index: {}]
  %s7 = sld [smem:[#allocation0]]
  $region34: #{forward.10} parent=0
    _
  %s9 = ssub.s32 1, %s7
  %s10 = scalar_select 0, %s9, %s7
  // Predicated region
  $region2: #{forward.10} parent=0 // pred_check
    _
  $region3: #{forward.10} parent=0 // pred_check_branch
    %12 = sbr.rel (0) target = $region5
  $region4: #{forward.10} parent=0 // pred_region
    _
  $region5: #{forward.10} parent=0 // pred_fallthru
    _
  // Predicated region
  $region6: #{forward.10} parent=0 // pred_check
    _
  $region7: #{forward.10} parent=0 // pred_check_branch
    %14 = sbr.rel (0) target = $region9
  $region8: #{forward.10} parent=0 // pred_region
    _
  $region9: #{forward.10} parent=0 // pred_fallthru
    _
  // Predicated region
  $region10: #{forward.10} parent=0 // pred_check
    _
  $region11: #{forward.10} parent=0 // pred_check_branch
    %16 = sbr.rel (0) target = $region13
  $region12: #{forward.10} parent=0 // pred_region
    _
  $region13: #{forward.10} parent=0 // pred_fallthru
    _
  // Predicated region
  $region14: #{forward.10} parent=0 // pred_check
    _
  $region15: #{forward.10} parent=0 // pred_check_branch
    %18 = sbr.rel (0) target = $region17
  $region16: #{forward.10} parent=0 // pred_region
    _
  $region17: #{forward.10} parent=0 // pred_fallthru
    _
  // Predicated region
  $region18: #{forward.10} parent=0 // pred_check
    _
  $region19: #{forward.10} parent=0 // pred_check_branch
    %20 = sbr.rel (0) target = $region21
  $region20: #{forward.10} parent=0 // pred_region
    _
  $region21: #{forward.10} parent=0 // pred_fallthru
    _
  // Predicated region
  $region22: #{forward.10} parent=0 // pred_check
    _
  $region23: #{forward.10} parent=0 // pred_check_branch
    %22 = sbr.rel (0) target = $region25
  $region24: #{forward.10} parent=0 // pred_region
    _
  $region25: #{forward.10} parent=0 // pred_fallthru
    _
  %v24 = vld [vmem:[%s0] sm:$0xf]
  %v25 = vld [vmem:[%s0 + $0x4] sm:$0xf]
  %v26 = vld [vmem:[%s1] sm:$0xf]
  %v27 = vld [vmem:[%s1 + $0x4] sm:$0xf]
  %v28 = vld [vmem:[%s1 + $0x8] sm:$0xf]
  %v29 = vld [vmem:[%s1 + $0xc] sm:$0xf]
  %v30 = vld [vmem:[%s2] sm:$0x1]
  %v32 = vlaneseq
  %v33 = vshrl.u32 %v32, 7
  %v34 = vsub.s32 0, %v33
  %v35 = vrot.slane %v30, %v34
  %v39 = vunpack.c.l.b16 %v24
  %v40 = vunpack.c.l.b16 %v25
  %v41 = vpack.c.b16 %v40, %v39
  %v46 = vunpack.c.l.b16 %v26
  %v47 = vunpack.c.l.b16 %v27
  %v48 = vunpack.c.l.b16 %v28
  %v49 = vunpack.c.l.b16 %v29
  %v50 = vpack.c.b16 %v47, %v46
  %v51 = vpack.c.b16 %v49, %v48
  %vm54 = vcmask 261120
  %v56 = vsel %vm54, %v41, 0
  %58 = vmatprep.subr.bf16.mxu0 0
  %59 = vmatpush1.bf16.msra.mxu0 %v50
  %60 = vmatprep.subr.bf16.mxu0 0
  %61 = vmatpush1.bf16.msra.mxu0 %v51
  %62 = vmatprep.subr.bf16.mxu0 0
  %63 = vmatpush1.bf16.msra.mxu0 0
  %64 = vmatprep.subr.bf16.mxu0 0
  %65 = vmatpush1.bf16.msra.mxu0 0
  %66 = vmatprep.subr.bf16.mxu0 0
  %67 = vmatpush1.bf16.msra.mxu0 0
  %68 = vmatprep.subr.bf16.mxu0 0
  %69 = vmatpush1.bf16.msra.mxu0 0
  %70 = vmatprep.subr.bf16.mxu0 0
  %71 = vmatpush1.bf16.msra.mxu0 0
  %72 = vmatprep.subr.bf16.mxu0 0
  %73 = vmatpush1.bf16.msra.mxu0 0
  %74 = vmatprep.subr.bf16.mxu0 0
  %75 = vmatpush1.bf16.msra.mxu0 0
  %76 = vmatprep.subr.bf16.mxu0 0
  %77 = vmatpush1.bf16.msra.mxu0 0
  %78 = vmatprep.subr.bf16.mxu0 0
  %79 = vmatpush1.bf16.msra.mxu0 0
  %80 = vmatprep.subr.bf16.mxu0 0
  %81 = vmatpush1.bf16.msra.mxu0 0
  %82 = vmatprep.subr.bf16.mxu0 0
  %83 = vmatpush1.bf16.msra.mxu0 0
  %84 = vmatprep.subr.bf16.mxu0 0
  %85 = vmatpush1.bf16.msra.mxu0 0
  %86 = vmatprep.subr.bf16.mxu0 0
  %87 = vmatpush1.bf16.msra.mxu0 0
  %88 = vmatprep.subr.bf16.mxu0 0
  %89 = vmatpush1.bf16.msra.mxu0 0
  %90 = vmatprep.mubr.bf16.mxu0 0
  %91 = vmatmul.mubr.bf16.gmra.mrb[0].mxu0 %v56
  %v92 = vpop.f32.mrb[0].mxu0
  %v93 = vadd.f32 %v35, %v92
  %v94 = vpop.f32.mrb[0].mxu0
  %v95 = vpop.f32.mrb[0].mxu0
  %v96 = vadd.f32 %v35, %v95
  %v97 = vpop.f32.mrb[0].mxu0
  %98 = vdwg.mxu0
  %v99 = vld [vmem:[%s3] sm:$0xff]
  %v100 = vld [vmem:[%s3 + $0x8] sm:$0xff]
  %v101 = vadd.f32 %v99, %v93
  %v102 = vadd.f32 %v100, %v96
  %v103 = vsel %vm54, %v101, 0.0
  %104 = vadd.xlane.f32.xlu0 %v103
  %v105 = vpop.xlane.xlu0 %104
  %v106 = vsel %vm54, %v102, 0.0
  %107 = vadd.xlane.f32.xlu0 %v106
  %v108 = vpop.xlane.xlu0 %107
  %v109 = vrcp.pop 32.0
  %v110 = vmul.f32 %v105, %v109
  %v111 = vmul.f32 %v108, %v109
  %v112 = vsub.f32 %v101, %v110
  %v113 = vsub.f32 %v102, %v111
  %v114 = vmul.f32 %v112, %v112
  %v115 = vmul.f32 %v113, %v113
  %v116 = vsel %vm54, %v114, 0.0
  %117 = vadd.xlane.f32.xlu0 %v116
  %v118 = vpop.xlane.xlu0 %117
  %v119 = vsel %vm54, %v115, 0.0
  %120 = vadd.xlane.f32.xlu0 %v119
  %v121 = vpop.xlane.xlu0 %120
  %v122 = vmul.f32 %v118, %v109
  %v123 = vmul.f32 %v121, %v109
  %v124 = vadd.f32 %v122, 1e-05
  %v125 = vadd.f32 %v123, 1e-05
  %v126 = vrsqrt.pop %v124
  %v127 = vrsqrt.pop %v125
  %v128 = vmul.f32 %v112, %v126
  %v129 = vmul.f32 %v113, %v127
  %v130 = vld [vmem:[%s4] sm:$0x1]
  %v132 = vlaneseq
  %v133 = vshrl.u32 %v132, 7
  %v134 = vsub.s32 0, %v133
  %v135 = vrot.slane %v130, %v134
  %v137 = vmul.f32 %v128, %v135
  %v138 = vmul.f32 %v129, %v135
  %v139 = vld [vmem:[%s5] sm:$0x1]
  %v141 = vlaneseq
  %v142 = vshrl.u32 %v141, 7
  %v143 = vsub.s32 0, %v142
  %v144 = vrot.slane %v139, %v143
  %v146 = vadd.f32 %v137, %v144
  %v147 = vadd.f32 %v138, %v144
  %148 = vst.msk [vmem:[%s6] sm:$0xff] %vm54, %v146
  %149 = vst.msk [vmem:[%s6 + $0x8] sm:$0xff] %vm54, %v147
  // Predicated region
  $region26: #{forward.10} parent=0 // pred_check
    _
  $region27: #{forward.10} parent=0 // pred_check_branch
    %151 = sbr.rel (0) target = $region29
  $region28: #{forward.10} parent=0 // pred_region
    _
  $region29: #{forward.10} parent=0 // pred_fallthru
    _
  // Predicated region
  $region30: #{forward.10} parent=0 // pred_check
    _
  $region31: #{forward.10} parent=0 // pred_check_branch
    %153 = sbr.rel (0) target = $region33
  $region32: #{forward.10} parent=0 // pred_region
    _
  $region33: #{forward.10} parent=0 // pred_fallthru
    _

// kernel: forward.8
$region0: #{forward.8}
  #allocation0 [shape = 'u32[]', space=smem, size = 0x4, offset = 0x4, fixed_abs, tag = 'smem constant byte address 0x4 - core index']
  #allocation1 [shape = 'u32[144,128]{1,0:T(1,128)}', space=vmem, size = 0x12000, scoped, tag = 'internal scratch']
  %s0 = inlined_call_operand.vmem [shape: f32[16,32], index: 0, kind: input, shape index: {}]
  %s1 = inlined_call_operand.vmem [shape: bf16[32,96], index: 1, kind: input, shape index: {}]
  %s2 = inlined_call_operand.vmem [shape: f32[1,96], index: 2, kind: input, shape index: {}]
  %s3 = inlined_call_operand.vmem [shape: bf16[16,96], index: 3, kind: output, shape index: {}]
  %s4 = sld [smem:[#allocation0]]
  $region22: #{forward.8} parent=0
    _
  %s6 = ssub.s32 1, %s4
  %s7 = scalar_select 0, %s6, %s4
  // Predicated region
  $region2: #{forward.8} parent=0 // pred_check
    _
  $region3: #{forward.8} parent=0 // pred_check_branch
    %9 = sbr.rel (0) target = $region5
  $region4: #{forward.8} parent=0 // pred_region
    _
  $region5: #{forward.8} parent=0 // pred_fallthru
    _
  // Predicated region
  $region6: #{forward.8} parent=0 // pred_check
    _
  $region7: #{forward.8} parent=0 // pred_check_branch
    %11 = sbr.rel (0) target = $region9
  $region8: #{forward.8} parent=0 // pred_region
    _
  $region9: #{forward.8} parent=0 // pred_fallthru
    _
  // Predicated region
  $region10: #{forward.8} parent=0 // pred_check
    _
  $region11: #{forward.8} parent=0 // pred_check_branch
    %13 = sbr.rel (0) target = $region13
  $region12: #{forward.8} parent=0 // pred_region
    _
  $region13: #{forward.8} parent=0 // pred_fallthru
    _
  %v15 = vld [vmem:[%s0] sm:$0xff]
  %v16 = vld [vmem:[%s0 + $0x8] sm:$0xff]
  %v17 = vpack.c.bf16 %v16, %v15
  %v18 = vld [vmem:[%s1] sm:$0xf]
  %v19 = vld [vmem:[%s1 + $0x4] sm:$0xf]
  %v20 = vld [vmem:[%s1 + $0x8] sm:$0xf]
  %v21 = vld [vmem:[%s1 + $0xc] sm:$0xf]
  %v22 = vld [vmem:[%s2] sm:$0x1]
  %v24 = vlaneseq
  %v25 = vshrl.u32 %v24, 7
  %v26 = vsub.s32 0, %v25
  %v27 = vrot.slane %v22, %v26
  %v33 = vunpack.c.l.b16 %v18
  %v34 = vunpack.c.l.b16 %v19
  %v35 = vunpack.c.l.b16 %v20
  %v36 = vunpack.c.l.b16 %v21
  %v37 = vpack.c.b16 %v34, %v33
  %v38 = vpack.c.b16 %v36, %v35
  %vm41 = vcmask 261120
  %v43 = vsel %vm41, %v17, 0
  %45 = vmatprep.subr.bf16.mxu0 0
  %46 = vmatpush1.bf16.msra.mxu0 %v37
  %47 = vmatprep.subr.bf16.mxu0 0
  %48 = vmatpush1.bf16.msra.mxu0 %v38
  %49 = vmatprep.subr.bf16.mxu0 0
  %50 = vmatpush1.bf16.msra.mxu0 0
  %51 = vmatprep.subr.bf16.mxu0 0
  %52 = vmatpush1.bf16.msra.mxu0 0
  %53 = vmatprep.subr.bf16.mxu0 0
  %54 = vmatpush1.bf16.msra.mxu0 0
  %55 = vmatprep.subr.bf16.mxu0 0
  %56 = vmatpush1.bf16.msra.mxu0 0
  %57 = vmatprep.subr.bf16.mxu0 0
  %58 = vmatpush1.bf16.msra.mxu0 0
  %59 = vmatprep.subr.bf16.mxu0 0
  %60 = vmatpush1.bf16.msra.mxu0 0
  %61 = vmatprep.subr.bf16.mxu0 0
  %62 = vmatpush1.bf16.msra.mxu0 0
  %63 = vmatprep.subr.bf16.mxu0 0
  %64 = vmatpush1.bf16.msra.mxu0 0
  %65 = vmatprep.subr.bf16.mxu0 0
  %66 = vmatpush1.bf16.msra.mxu0 0
  %67 = vmatprep.subr.bf16.mxu0 0
  %68 = vmatpush1.bf16.msra.mxu0 0
  %69 = vmatprep.subr.bf16.mxu0 0
  %70 = vmatpush1.bf16.msra.mxu0 0
  %71 = vmatprep.subr.bf16.mxu0 0
  %72 = vmatpush1.bf16.msra.mxu0 0
  %73 = vmatprep.subr.bf16.mxu0 0
  %74 = vmatpush1.bf16.msra.mxu0 0
  %75 = vmatprep.subr.bf16.mxu0 0
  %76 = vmatpush1.bf16.msra.mxu0 0
  %77 = vmatprep.mubr.bf16.mxu0 0
  %78 = vmatmul.mubr.bf16.gmra.mrb[0].mxu0 %v43
  %v79 = vpop.f32.mrb[0].mxu0
  %v80 = vadd.f32 %v27, %v79
  %v81 = vpop.f32.mrb[0].mxu0
  %v82 = vpop.f32.mrb[0].mxu0
  %v83 = vadd.f32 %v27, %v82
  %v84 = vpop.f32.mrb[0].mxu0
  %85 = vdwg.mxu0
  %v86 = vpack.c.bf16 %v83, %v80
  %v88 = vunpack.c.l.b16 %v86
  %v89 = vunpack.c.h.b16 %v86
  %v90 = vpack.c.b16 %v88, %v88
  %v91 = vpack.c.b16 %v89, %v89
  %vm94 = vcmask 781312
  %95 = vst.msk [vmem:[%s3] sm:$0xf] %vm94, %v90
  %96 = vst.msk [vmem:[%s3 + $0x4] sm:$0xf] %vm94, %v91
  // Predicated region
  $region14: #{forward.8} parent=0 // pred_check
    _
  $region15: #{forward.8} parent=0 // pred_check_branch
    %98 = sbr.rel (0) target = $region17
  $region16: #{forward.8} parent=0 // pred_region
    _
  $region17: #{forward.8} parent=0 // pred_fallthru
    _
  // Predicated region
  $region18: #{forward.8} parent=0 // pred_check
    _
  $region19: #{forward.8} parent=0 // pred_check_branch
    %100 = sbr.rel (0) target = $region21
  $region20: #{forward.8} parent=0 // pred_region
    _
  $region21: #{forward.8} parent=0 // pred_fallthru
    _

// kernel: forward.9
$region0: #{forward.9}
  #allocation0 [shape = 'u32[]', space=smem, size = 0x4, offset = 0x4, fixed_abs, tag = 'smem constant byte address 0x4 - core index']
  #allocation1 [shape = 'u32[144,128]{1,0:T(1,128)}', space=vmem, size = 0x12000, scoped, tag = 'internal scratch']
  #allocation2 [shape = 's32[1]{0}', space=sflag, size = 0x4, scoped, tag = 'scoped memory for forward.9']
  #allocation3 [shape = 'u8[512]{0}', space=smem, size = 0x200, scoped, tag = 'prefetched SMEM operand 0']
  %s0 = inlined_call_operand.vmem [shape: s32[2], index: 0, kind: input, shape index: {}]
  %s1 = inlined_call_operand.vmem [shape: bf16[2,2,8,16], index: 1, kind: input, shape index: {}]
  %s2 = inlined_call_operand.vmem [shape: bf16[2,2,8,16], index: 2, kind: input, shape index: {}]
  %s3 = inlined_call_operand.vmem [shape: bf16[2,2,8,16], index: 3, kind: input, shape index: {}]
  %s4 = inlined_call_operand.vmem [shape: bf16[9,16], index: 4, kind: input, shape index: {}]
  %s5 = inlined_call_operand.vmem [shape: f32[9,16], index: 5, kind: input, shape index: {}]
  %s6 = inlined_call_operand.vmem [shape: bf16[2,2,8,16], index: 6, kind: output, shape index: {}]
  %s7 = sld [smem:[#allocation0]]
  $region53: #{forward.9} parent=0
    _
  %s9 = ssub.s32 1, %s7
  %s10 = scalar_select 0, %s9, %s7
  %s11 = sshll.u32 %s0, 4
  %s12 = int_to_ptr.vmem [resolvable:$true] %s11
  %14 = dma.vmem_to_smem %s12, 16, [#allocation3], [#allocation2]
  %15 = dma.done [#allocation2], 16
  %16 = sfence
  loop: start=0, step=1, limit=4
  $region2: #{forward.9} parent=0 // loop_pre_header
    _
  $region3: #{forward.9} parent=0 // loop_header
    %s18 = sphi 0, %s22
    %p19 = scmp.ge.s32.totalorder %s18, 4
    %s28 = sphi 0, %s30
    %s31 = sphi 0, %s28
    %s32 = sphi 0, %s31
    %s48 = sphi 0, %s32
    %s54 = sphi 0, %s56
    %s57 = sphi 0, %s54
    %s58 = sphi 0, %s57
    %s74 = sphi 0, %s58
    %s80 = sphi 0, %s82
    %s83 = sphi 0, %s80
    %s84 = sphi 0, %s83
    %s100 = sphi 0, %s84
    %s104 = sphi 0, %s104
    %s106 = sphi 0, %s104
    %s107 = sphi 0, %s106
    %s121 = sphi 0, %s107
    %s125 = sphi 0, %s125
    %s127 = sphi 0, %s125
    %s128 = sphi 0, %s127
    %s142 = sphi 0, %s128
    %s148 = sphi 0, %s150
    %s151 = sphi 0, %s148
    %s152 = sphi 0, %s151
    %s168 = sphi 0, %s152
  $region4: #{forward.9} parent=0 // loop_header_branch
    %21 = sbr.rel (%p19) target = $region8
  $region5: #{forward.9} parent=0 // loop_body
    %s23 = ssub.s32 %s18, 1
    %s24 = ssub.s32 %s18, 2
    %s25 = sadd.s32 %s18, 1
    %s26 = ssub.s32 %s18, %s25
    %p27 = scmp.eq.s32.totalorder %s26, 0
    %s29 = sadd.s32 %s28, 1
    %s30 = scalar_select %p27, %s28, %s29
    %p33 = pneg %p27
    %p34 = scmp.eq.s32.totalorder %s18, 1
    %p35 = por %p33, %p34
    %p36 = scmp.ne.s32.totalorder %s28, %s31
    %p37 = scmp.eq.s32.totalorder %s18, 0
    %p38 = por %p36, %p37
    %p39 = scmp.ne.s32.totalorder %s28, %s31
    %p40 = scmp.eq.s32.totalorder %s23, 1
    %p41 = por %p39, %p40
    %p42 = scmp.ne.s32.totalorder %s31, %s32
    %p43 = scmp.eq.s32.totalorder %s23, 0
    %p44 = por %p42, %p43
    %p45 = scmp.ne.s32.totalorder %s31, %s32
    %p46 = scmp.eq.s32.totalorder %s24, 1
    %p47 = por %p45, %p46
    %p49 = scmp.ne.s32.totalorder %s32, %s48
    %p50 = scmp.eq.s32.totalorder %s24, 0
    %p51 = por %p49, %p50
    %s52 = ssub.s32 %s18, %s25
    %p53 = scmp.eq.s32.totalorder %s52, 0
    %s55 = sadd.s32 %s54, 1
    %s56 = scalar_select %p53, %s54, %s55
    %p59 = pneg %p53
    %p60 = scmp.eq.s32.totalorder %s18, 1
    %p61 = por %p59, %p60
    %p62 = scmp.ne.s32.totalorder %s54, %s57
    %p63 = scmp.eq.s32.totalorder %s18, 0
    %p64 = por %p62, %p63
    %p65 = scmp.ne.s32.totalorder %s54, %s57
    %p66 = scmp.eq.s32.totalorder %s23, 1
    %p67 = por %p65, %p66
    %p68 = scmp.ne.s32.totalorder %s57, %s58
    %p69 = scmp.eq.s32.totalorder %s23, 0
    %p70 = por %p68, %p69
    %p71 = scmp.ne.s32.totalorder %s57, %s58
    %p72 = scmp.eq.s32.totalorder %s24, 1
    %p73 = por %p71, %p72
    %p75 = scmp.ne.s32.totalorder %s58, %s74
    %p76 = scmp.eq.s32.totalorder %s24, 0
    %p77 = por %p75, %p76
    %s78 = ssub.s32 %s18, %s25
    %p79 = scmp.eq.s32.totalorder %s78, 0
    %s81 = sadd.s32 %s80, 1
    %s82 = scalar_select %p79, %s80, %s81
    %p85 = pneg %p79
    %p86 = scmp.eq.s32.totalorder %s18, 1
    %p87 = por %p85, %p86
    %p88 = scmp.ne.s32.totalorder %s80, %s83
    %p89 = scmp.eq.s32.totalorder %s18, 0
    %p90 = por %p88, %p89
    %p91 = scmp.ne.s32.totalorder %s80, %s83
    %p92 = scmp.eq.s32.totalorder %s23, 1
    %p93 = por %p91, %p92
    %p94 = scmp.ne.s32.totalorder %s83, %s84
    %p95 = scmp.eq.s32.totalorder %s23, 0
    %p96 = por %p94, %p95
    %p97 = scmp.ne.s32.totalorder %s83, %s84
    %p98 = scmp.eq.s32.totalorder %s24, 1
    %p99 = por %p97, %p98
    %p101 = scmp.ne.s32.totalorder %s84, %s100
    %p102 = scmp.eq.s32.totalorder %s24, 0
    %p103 = por %p101, %p102
    %s105 = sadd.s32 %s104, 1
    %p108 = scmp.eq.s32.totalorder %s18, 1
    %p109 = scmp.ne.s32.totalorder %s104, %s106
    %p110 = scmp.eq.s32.totalorder %s18, 0
    %p111 = por %p109, %p110
    %p112 = scmp.ne.s32.totalorder %s104, %s106
    %p113 = scmp.eq.s32.totalorder %s23, 1
    %p114 = por %p112, %p113
    %p115 = scmp.ne.s32.totalorder %s106, %s107
    %p116 = scmp.eq.s32.totalorder %s23, 0
    %p117 = por %p115, %p116
    %p118 = scmp.ne.s32.totalorder %s106, %s107
    %p119 = scmp.eq.s32.totalorder %s24, 1
    %p120 = por %p118, %p119
    %p122 = scmp.ne.s32.totalorder %s107, %s121
    %p123 = scmp.eq.s32.totalorder %s24, 0
    %p124 = por %p122, %p123
    %s126 = sadd.s32 %s125, 1
    %p129 = scmp.eq.s32.totalorder %s18, 1
    %p130 = scmp.ne.s32.totalorder %s125, %s127
    %p131 = scmp.eq.s32.totalorder %s18, 0
    %p132 = por %p130, %p131
    %p133 = scmp.ne.s32.totalorder %s125, %s127
    %p134 = scmp.eq.s32.totalorder %s23, 1
    %p135 = por %p133, %p134
    %p136 = scmp.ne.s32.totalorder %s127, %s128
    %p137 = scmp.eq.s32.totalorder %s23, 0
    %p138 = por %p136, %p137
    %p139 = scmp.ne.s32.totalorder %s127, %s128
    %p140 = scmp.eq.s32.totalorder %s24, 1
    %p141 = por %p139, %p140
    %p143 = scmp.ne.s32.totalorder %s128, %s142
    %p144 = scmp.eq.s32.totalorder %s24, 0
    %p145 = por %p143, %p144
    %s146 = ssub.s32 %s18, %s25
    %p147 = scmp.eq.s32.totalorder %s146, 0
    %s149 = sadd.s32 %s148, 1
    %s150 = scalar_select %p147, %s148, %s149
    %p153 = pneg %p147
    %p154 = scmp.eq.s32.totalorder %s18, 1
    %p155 = por %p153, %p154
    %p156 = scmp.ne.s32.totalorder %s148, %s151
    %p157 = scmp.eq.s32.totalorder %s18, 0
    %p158 = por %p156, %p157
    %p159 = scmp.ne.s32.totalorder %s148, %s151
    %p160 = scmp.eq.s32.totalorder %s23, 1
    %p161 = por %p159, %p160
    %p162 = scmp.ne.s32.totalorder %s151, %s152
    %p163 = scmp.eq.s32.totalorder %s23, 0
    %p164 = por %p162, %p163
    %p165 = scmp.ne.s32.totalorder %s151, %s152
    %p166 = scmp.eq.s32.totalorder %s24, 1
    %p167 = por %p165, %p166
    %p169 = scmp.ne.s32.totalorder %s152, %s168
    %p170 = scmp.eq.s32.totalorder %s24, 0
    %p171 = por %p169, %p170
    %p172 = scmp.le.s32.totalorder 1, %s18
    %p173 = scmp.lt.s32.totalorder %s18, 3
    %p174 = pnand %p172, %p173
    %p175 = pneg %p174
    // Predicated region
    $region9: #{forward.9} parent=5 // pred_check
      _
    $region10: #{forward.9} parent=5 // pred_check_branch
      %177 = sbr.rel (%p174) target = $region12
    $region11: #{forward.9} parent=5 // pred_region
      %s178 = ssub.s32 %s18, 1
      // Predicated region
      $region13: #{forward.9} parent=11 // pred_check
        %p179 = pneg %p117
      $region14: #{forward.9} parent=11 // pred_check_branch
        %181 = sbr.rel (%p179) target = $region16
      $region15: #{forward.9} parent=11 // pred_region
        _
      $region16: #{forward.9} parent=11 // pred_fallthru
        _
      // Predicated region
      $region17: #{forward.9} parent=11 // pred_check
        %p182 = pneg %p138
      $region18: #{forward.9} parent=11 // pred_check_branch
        %184 = sbr.rel (%p182) target = $region20
      $region19: #{forward.9} parent=11 // pred_region
        _
      $region20: #{forward.9} parent=11 // pred_fallthru
        _
    $region12: #{forward.9} parent=5 // pred_fallthru
      _
    %p185 = scmp.lt.s32.totalorder %s18, 2
    // Predicated region
    $region21: #{forward.9} parent=5 // pred_check
      %p186 = pneg %p185
    $region22: #{forward.9} parent=5 // pred_check_branch
      %188 = sbr.rel (%p186) target = $region24
    $region23: #{forward.9} parent=5 // pred_region
      // Predicated region
      $region25: #{forward.9} parent=23 // pred_check
        %p189 = pneg %p38
      $region26: #{forward.9} parent=23 // pred_check_branch
        %191 = sbr.rel (%p189) target = $region28
      $region27: #{forward.9} parent=23 // pred_region
        %p192 = scmp.lt.s32.totalorder %s18, 1
        %s193 = scalar_select %p192, %s18, 1
        %s194 = smul.addr %s193, 2
        %s195 = smul.addr %s194, 4
        %s196 = scalar_lea.vmem %s1, %s195
      $region28: #{forward.9} parent=23 // pred_fallthru
        _
      // Predicated region
      $region29: #{forward.9} parent=23 // pred_check
        %p197 = pneg %p64
      $region30: #{forward.9} parent=23 // pred_check_branch
        %199 = sbr.rel (%p197) target = $region32
      $region31: #{forward.9} parent=23 // pred_region
        %p200 = scmp.lt.s32.totalorder %s18, 1
        %s201 = scalar_select %p200, %s18, 1
        %s202 = smul.addr %s201, 2
        %s203 = smul.addr %s202, 4
        %s204 = scalar_lea.vmem %s2, %s203
      $region32: #{forward.9} parent=23 // pred_fallthru
        _
      // Predicated region
      $region33: #{forward.9} parent=23 // pred_check
        %p205 = pneg %p90
      $region34: #{forward.9} parent=23 // pred_check_branch
        %207 = sbr.rel (%p205) target = $region36
      $region35: #{forward.9} parent=23 // pred_region
        %p208 = scmp.lt.s32.totalorder %s18, 1
        %s209 = scalar_select %p208, %s18, 1
        %s210 = smul.addr %s209, 2
        %s211 = smul.addr %s210, 4
        %s212 = scalar_lea.vmem %s3, %s211
      $region36: #{forward.9} parent=23 // pred_fallthru
        _
    $region24: #{forward.9} parent=5 // pred_fallthru
      _
    %p213 = scmp.le.s32.totalorder 1, %s18
    %p214 = scmp.lt.s32.totalorder %s18, 3
    %p215 = pnand %p213, %p214
    %p216 = pneg %p215
    // Predicated region
    $region37: #{forward.9} parent=5 // pred_check
      _
    $region38: #{forward.9} parent=5 // pred_check_branch
      %218 = sbr.rel (%p215) target = $region40
    $region39: #{forward.9} parent=5 // pred_region
      %s219 = ssub.s32 %s18, 1
      %p220 = scmp.lt.s32.totalorder %s23, 1
      %s221 = scalar_select %p220, %s23, 1
      %s222 = smul.addr %s221, 2
      %s223 = smul.addr %s222, 4
      %s224 = scalar_lea.vmem %s1, %s223
      %p225 = pneg %p44
      %p226 = pneg %p41
      %p227 = scmp.lt.s32.totalorder %s23, 1
      %s228 = scalar_select %p227, %s23, 1
      %s229 = smul.addr %s228, 2
      %s230 = smul.addr %s229, 4
      %s231 = scalar_lea.vmem %s2, %s230
      %p232 = pneg %p70
      %p233 = pneg %p67
      %p234 = scmp.lt.s32.totalorder %s23, 1
      %s235 = scalar_select %p234, %s23, 1
      %s236 = smul.addr %s235, 2
      %s237 = smul.addr %s236, 4
      %s238 = scalar_lea.vmem %s3, %s237
      %p239 = pneg %p96
      %p240 = pneg %p93
      %p241 = pneg %p117
      %p242 = pneg %p114
      %p243 = pneg %p138
      %p244 = pneg %p135
      %p245 = pneg %p164
      %p246 = pneg %p161
      %p247 = scmp.lt.s32.totalorder %s23, 1
      %s248 = scalar_select %p247, %s23, 1
      %s249 = smul.addr %s248, 2
      %s250 = smul.addr %s249, 4
      %s251 = scalar_lea.vmem %s6, %s250
      %p252 = scmp.lt.s32.totalorder %s23, 1
      %s253 = scalar_select %p252, %s23, 1
      %s254 = smul.addr %s253, 2
      %s255 = smul.addr %s254, 4
      %s256 = scalar_lea.vmem %s1, %s255
      %p257 = scmp.lt.s32.totalorder %s23, 1
      %s258 = scalar_select %p257, %s23, 1
      %s259 = smul.addr %s258, 2
      %s260 = smul.addr %s259, 4
      %s261 = scalar_lea.vmem %s2, %s260
      %p262 = scmp.lt.s32.totalorder %s23, 1
      %s263 = scalar_select %p262, %s23, 1
      %s264 = smul.addr %s263, 2
      %s265 = smul.addr %s264, 4
      %s266 = scalar_lea.vmem %s3, %s265
      %p267 = scmp.lt.s32.totalorder %s23, 1
      %s268 = scalar_select %p267, %s23, 1
      %s269 = smul.addr %s268, 2
      %s270 = smul.addr %s269, 4
      %s271 = scalar_lea.vmem %s6, %s270
      %s273 = sld [smem:[#allocation3 + %s23]]
      %v274 = vld [vmem:[%s256] sm:$0xf]
      %v275 = vld [vmem:[%s256 + $0x4] sm:$0xf]
      %v276 = vld [vmem:[%s261] sm:$0xf]
      %v277 = vld [vmem:[%s261 + $0x4] sm:$0xf]
      %v278 = vld [vmem:[%s266] sm:$0xf]
      %v279 = vld [vmem:[%s266 + $0x4] sm:$0xf]
      %v280 = vld [vmem:[%s4] sm:$0xf]
      %v281 = vld [vmem:[%s4 + $0x4] sm:$0x1]
      %v284 = vunpack.c.l.b16 %v274
      %v285 = vunpack.c.l.b16 %v275
      %v286 = vpack.c.b16 %v285, %v284
      %v289 = vunpack.c.l.b16 %v280
      %v290 = vunpack.c.l.b16 %v281
      %v291 = vpack.c.b16 %v290, %v289
      %vm292 = vcmask 130048
      %v294 = vsel %vm292, %v286, 0
      %v297 = vsel %vm292, %v291, 0
      %299 = vmatprep.subr.bf16.mxu0 0
      %300 = vmatpush1.bf16.xpose.msra.mxu0 %v297
      %301 = vmatprep.subr.bf16.mxu0 0
      %302 = vmatpush1.bf16.xpose.msra.mxu0 0
      %303 = vmatprep.subr.bf16.mxu0 0
      %304 = vmatpush1.bf16.xpose.msra.mxu0 0
      %305 = vmatprep.subr.bf16.mxu0 0
      %306 = vmatpush1.bf16.xpose.msra.mxu0 0
      %307 = vmatprep.subr.bf16.mxu0 0
      %308 = vmatpush1.bf16.xpose.msra.mxu0 0
      %309 = vmatprep.subr.bf16.mxu0 0
      %310 = vmatpush1.bf16.xpose.msra.mxu0 0
      %311 = vmatprep.subr.bf16.mxu0 0
      %312 = vmatpush1.bf16.xpose.msra.mxu0 0
      %313 = vmatprep.subr.bf16.mxu0 0
      %314 = vmatpush1.bf16.xpose.msra.mxu0 0
      %315 = vmatprep.subr.bf16.mxu0 0
      %316 = vmatpush1.bf16.xpose.msra.mxu0 0
      %317 = vmatprep.subr.bf16.mxu0 0
      %318 = vmatpush1.bf16.xpose.msra.mxu0 0
      %319 = vmatprep.subr.bf16.mxu0 0
      %320 = vmatpush1.bf16.xpose.msra.mxu0 0
      %321 = vmatprep.subr.bf16.mxu0 0
      %322 = vmatpush1.bf16.xpose.msra.mxu0 0
      %323 = vmatprep.subr.bf16.mxu0 0
      %324 = vmatpush1.bf16.xpose.msra.mxu0 0
      %325 = vmatprep.subr.bf16.mxu0 0
      %326 = vmatpush1.bf16.xpose.msra.mxu0 0
      %327 = vmatprep.subr.bf16.mxu0 0
      %328 = vmatpush1.bf16.xpose.msra.mxu0 0
      %329 = vmatprep.subr.bf16.mxu0 0
      %330 = vmatpush1.bf16.xpose.msra.mxu0 0
      %331 = vmatprep.mubr.bf16.mxu0 0
      %332 = vmatmul.mubr.bf16.gmra.mrb[0].mxu0 %v294
      %v333 = vpop.f32.mrb[0].mxu0
      %v334 = vadd.f32 0.0, %v333
      %v335 = vpop.f32.mrb[0].mxu0
      %v336 = vpop.f32.mrb[0].mxu0
      %v337 = vadd.f32 0.0, %v336
      %v338 = vpop.f32.mrb[0].mxu0
      %339 = vdwg.mxu0
      %v340 = vlaneseq
      %v341 = vshrl.u32 %v340, 7
      %v342 = vlaneseq
      %v343 = vand.u32 %v342, 127
      %v344 = vsub.s32 %v343, %v341
      %vm345 = vcmp.eq.s32.totalorder %v344, 4294967292
      %v346 = vsel %vm345, 1, 0
      %vm347 = vcmp.eq.s32.totalorder %v346, 1
      %349 = vset.pattern.permute.xlu0 0
      %350 = vperm.xlu0 %349, %v334
      %v351 = vpop.permute.xlu0 %350
      %354 = vset.pattern.permute.xlu0 0
      %355 = vperm.xlu0 %354, %v337
      %v356 = vpop.permute.xlu0 %355
      %v358 = vsel %vm347, %v351, 0.0
      %v359 = vsel %vm347, %v356, 0.0
      %v361 = vsel %vm292, %v274, 0
      %v364 = vsel %vm292, %v276, 0
      %366 = vmatprep.subr.bf16.mxu0 0
      %367 = vmatpush1.bf16.xpose.msra.mxu0 %v364
      %368 = vmatprep.subr.bf16.mxu0 0
      %369 = vmatpush1.bf16.xpose.msra.mxu0 0
      %370 = vmatprep.subr.bf16.mxu0 0
      %371 = vmatpush1.bf16.xpose.msra.mxu0 0
      %372 = vmatprep.subr.bf16.mxu0 0
      %373 = vmatpush1.bf16.xpose.msra.mxu0 0
      %374 = vmatprep.subr.bf16.mxu0 0
      %375 = vmatpush1.bf16.xpose.msra.mxu0 0
      %376 = vmatprep.subr.bf16.mxu0 0
      %377 = vmatpush1.bf16.xpose.msra.mxu0 0
      %378 = vmatprep.subr.bf16.mxu0 0
      %379 = vmatpush1.bf16.xpose.msra.mxu0 0
      %380 = vmatprep.subr.bf16.mxu0 0
      %381 = vmatpush1.bf16.xpose.msra.mxu0 0
      %382 = vmatprep.subr.bf16.mxu0 0
      %383 = vmatpush1.bf16.xpose.msra.mxu0 0
      %384 = vmatprep.subr.bf16.mxu0 0
      %385 = vmatpush1.bf16.xpose.msra.mxu0 0
      %386 = vmatprep.subr.bf16.mxu0 0
      %387 = vmatpush1.bf16.xpose.msra.mxu0 0
      %388 = vmatprep.subr.bf16.mxu0 0
      %389 = vmatpush1.bf16.xpose.msra.mxu0 0
      %390 = vmatprep.subr.bf16.mxu0 0
      %391 = vmatpush1.bf16.xpose.msra.mxu0 0
      %392 = vmatprep.subr.bf16.mxu0 0
      %393 = vmatpush1.bf16.xpose.msra.mxu0 0
      %394 = vmatprep.subr.bf16.mxu0 0
      %395 = vmatpush1.bf16.xpose.msra.mxu0 0
      %396 = vmatprep.subr.bf16.mxu0 0
      %397 = vmatpush1.bf16.xpose.msra.mxu0 0
      %398 = vmatprep.mubr.bf16.mxu0 0
      %399 = vmatmul.mubr.bf16.gmra.mrb[0].mxu0 %v361
      %v400 = vpop.f32.mrb[0].mxu0
      %v401 = vadd.f32 %v358, %v400
      %v402 = vpop.f32.mrb[0].mxu0
      %v403 = vpop.f32.mrb[0].mxu0
      %v404 = vpop.f32.mrb[0].mxu0
      %405 = vdwg.mxu0
      %v407 = vsel %vm292, %v275, 0
      %v410 = vsel %vm292, %v277, 0
      %412 = vmatprep.subr.bf16.mxu0 0
      %413 = vmatpush1.bf16.xpose.msra.mxu0 %v410
      %414 = vmatprep.subr.bf16.mxu0 0
      %415 = vmatpush1.bf16.xpose.msra.mxu0 0
      %416 = vmatprep.subr.bf16.mxu0 0
      %417 = vmatpush1.bf16.xpose.msra.mxu0 0
      %418 = vmatprep.subr.bf16.mxu0 0
      %419 = vmatpush1.bf16.xpose.msra.mxu0 0
      %420 = vmatprep.subr.bf16.mxu0 0
      %421 = vmatpush1.bf16.xpose.msra.mxu0 0
      %422 = vmatprep.subr.bf16.mxu0 0
      %423 = vmatpush1.bf16.xpose.msra.mxu0 0
      %424 = vmatprep.subr.bf16.mxu0 0
      %425 = vmatpush1.bf16.xpose.msra.mxu0 0
      %426 = vmatprep.subr.bf16.mxu0 0
      %427 = vmatpush1.bf16.xpose.msra.mxu0 0
      %428 = vmatprep.subr.bf16.mxu0 0
      %429 = vmatpush1.bf16.xpose.msra.mxu0 0
      %430 = vmatprep.subr.bf16.mxu0 0
      %431 = vmatpush1.bf16.xpose.msra.mxu0 0
      %432 = vmatprep.subr.bf16.mxu0 0
      %433 = vmatpush1.bf16.xpose.msra.mxu0 0
      %434 = vmatprep.subr.bf16.mxu0 0
      %435 = vmatpush1.bf16.xpose.msra.mxu0 0
      %436 = vmatprep.subr.bf16.mxu0 0
      %437 = vmatpush1.bf16.xpose.msra.mxu0 0
      %438 = vmatprep.subr.bf16.mxu0 0
      %439 = vmatpush1.bf16.xpose.msra.mxu0 0
      %440 = vmatprep.subr.bf16.mxu0 0
      %441 = vmatpush1.bf16.xpose.msra.mxu0 0
      %442 = vmatprep.subr.bf16.mxu0 0
      %443 = vmatpush1.bf16.xpose.msra.mxu0 0
      %444 = vmatprep.mubr.bf16.mxu0 0
      %445 = vmatmul.mubr.bf16.gmra.mrb[0].mxu0 %v407
      %v446 = vpop.f32.mrb[0].mxu0
      %v447 = vadd.f32 %v359, %v446
      %v448 = vpop.f32.mrb[0].mxu0
      %v449 = vpop.f32.mrb[0].mxu0
      %v450 = vpop.f32.mrb[0].mxu0
      %451 = vdwg.mxu0
      %vm452 = vcmp.eq.s32.totalorder %v344, 4294967293
      %v453 = vsel %vm452, 1, 0
      %vm454 = vcmp.eq.s32.totalorder %v453, 1
      %455 = vset.pattern.permute.xlu0 1
      %456 = vperm.xlu0 %455, %v334
      %v457 = vpop.permute.xlu0 %456
      %459 = vset.pattern.permute.xlu0 1
      %460 = vperm.xlu0 %459, %v337
      %v461 = vpop.permute.xlu0 %460
      %v463 = vsel %vm454, %v457, 0.0
      %v464 = vsel %vm454, %v461, 0.0
      %v465 = vadd.f32 %v401, %v463
      %v466 = vadd.f32 %v447, %v464
      %vm467 = vcmp.eq.s32.totalorder %v344, 4294967294
      %v468 = vsel %vm467, 1, 0
      %vm469 = vcmp.eq.s32.totalorder %v468, 1
      %470 = vset.pattern.permute.xlu0 2
      %471 = vperm.xlu0 %470, %v334
      %v472 = vpop.permute.xlu0 %471
      %474 = vset.pattern.permute.xlu0 2
      %475 = vperm.xlu0 %474, %v337
      %v476 = vpop.permute.xlu0 %475
      %v478 = vsel %vm469, %v472, 0.0
      %v479 = vsel %vm469, %v476, 0.0
      %v480 = vadd.f32 %v465, %v478
      %v481 = vadd.f32 %v466, %v479
      %vm482 = vcmp.eq.s32.totalorder %v344, 4294967295
      %v483 = vsel %vm482, 1, 0
      %vm484 = vcmp.eq.s32.totalorder %v483, 1
      %485 = vset.pattern.permute.xlu0 3
      %486 = vperm.xlu0 %485, %v334
      %v487 = vpop.permute.xlu0 %486
      %489 = vset.pattern.permute.xlu0 3
      %490 = vperm.xlu0 %489, %v337
      %v491 = vpop.permute.xlu0 %490
      %v493 = vsel %vm484, %v487, 0.0
      %v494 = vsel %vm484, %v491, 0.0
      %v495 = vadd.f32 %v480, %v493
      %v496 = vadd.f32 %v481, %v494
      %vm497 = vcmp.eq.s32.totalorder %v344, 0
      %v498 = vsel %vm497, 1, 0
      %vm499 = vcmp.eq.s32.totalorder %v498, 1
      %500 = vset.pattern.permute.xlu0 4
      %501 = vperm.xlu0 %500, %v334
      %v502 = vpop.permute.xlu0 %501
      %504 = vset.pattern.permute.xlu0 4
      %505 = vperm.xlu0 %504, %v337
      %v506 = vpop.permute.xlu0 %505
      %v508 = vsel %vm499, %v502, 0.0
      %v509 = vsel %vm499, %v506, 0.0
      %v510 = vadd.f32 %v495, %v508
      %v511 = vadd.f32 %v496, %v509
      %vm512 = vcmp.eq.s32.totalorder %v344, 1
      %v513 = vsel %vm512, 1, 0
      %vm514 = vcmp.eq.s32.totalorder %v513, 1
      %515 = vset.pattern.permute.xlu0 5
      %516 = vperm.xlu0 %515, %v334
      %v517 = vpop.permute.xlu0 %516
      %519 = vset.pattern.permute.xlu0 5
      %520 = vperm.xlu0 %519, %v337
      %v521 = vpop.permute.xlu0 %520
      %v523 = vsel %vm514, %v517, 0.0
      %v524 = vsel %vm514, %v521, 0.0
      %v525 = vadd.f32 %v510, %v523
      %v526 = vadd.f32 %v511, %v524
      %vm527 = vcmp.eq.s32.totalorder %v344, 2
      %v528 = vsel %vm527, 1, 0
      %vm529 = vcmp.eq.s32.totalorder %v528, 1
      %530 = vset.pattern.permute.xlu0 6
      %531 = vperm.xlu0 %530, %v334
      %v532 = vpop.permute.xlu0 %531
      %534 = vset.pattern.permute.xlu0 6
      %535 = vperm.xlu0 %534, %v337
      %v536 = vpop.permute.xlu0 %535
      %v538 = vsel %vm529, %v532, 0.0
      %v539 = vsel %vm529, %v536, 0.0
      %v540 = vadd.f32 %v525, %v538
      %v541 = vadd.f32 %v526, %v539
      %vm542 = vcmp.eq.s32.totalorder %v344, 3
      %v543 = vsel %vm542, 1, 0
      %vm544 = vcmp.eq.s32.totalorder %v543, 1
      %545 = vset.pattern.permute.xlu0 7
      %546 = vperm.xlu0 %545, %v334
      %v547 = vpop.permute.xlu0 %546
      %549 = vset.pattern.permute.xlu0 7
      %550 = vperm.xlu0 %549, %v337
      %v551 = vpop.permute.xlu0 %550
      %v553 = vsel %vm544, %v547, 0.0
      %v554 = vsel %vm544, %v551, 0.0
      %v555 = vadd.f32 %v540, %v553
      %v556 = vadd.f32 %v541, %v554
      %vm557 = vcmp.eq.s32.totalorder %v344, 4
      %v558 = vsel %vm557, 1, 0
      %vm559 = vcmp.eq.s32.totalorder %v558, 1
      %560 = vset.pattern.permute.xlu0 8
      %561 = vperm.xlu0 %560, %v334
      %v562 = vpop.permute.xlu0 %561
      %564 = vset.pattern.permute.xlu0 8
      %565 = vperm.xlu0 %564, %v337
      %v566 = vpop.permute.xlu0 %565
      %v568 = vsel %vm559, %v562, 0.0
      %v569 = vsel %vm559, %v566, 0.0
      %v570 = vadd.f32 %v555, %v568
      %v571 = vadd.f32 %v556, %v569
      %v572 = vstv %s273
      %vm573 = vcmp.lt.s32.totalorder %v341, %v572
      %vm574 = vcmp.lt.s32.totalorder %v343, %v572
      %vm575 = vmand %vm573, %vm574
      %v576 = vsel %vm575, 1, 0
      %vm577 = vcmp.eq.s32.totalorder %v576, 1
      %v578 = vsel %vm577, %v570, -10000.0
      %v579 = vsel %vm577, %v571, -10000.0
      %vm580 = vcmask 64512
      %v581 = vsel %vm580, %v578, -inf
      %582 = vmax.xlane.f32.xlu0 %v581
      %v583 = vpop.xlane.xlu0 %582
      %v584 = vsel %vm580, %v579, -inf
      %585 = vmax.xlane.f32.xlu0 %v584
      %v586 = vpop.xlane.xlu0 %585
      %v587 = vsub.f32 %v578, %v583
      %v588 = vsub.f32 %v579, %v586
      %v589 = vmul.f32 %v587, 1.442695
      %v590 = vpow.pop %v589
      %v591 = vmul.f32 %v588, 1.442695
      %v592 = vpow.pop %v591
      %v593 = vsel %vm580, %v590, 0.0
      %594 = vadd.xlane.f32.xlu0 %v593
      %v595 = vpop.xlane.xlu0 %594
      %v596 = vsel %vm580, %v592, 0.0
      %597 = vadd.xlane.f32.xlu0 %v596
      %v598 = vpop.xlane.xlu0 %597
      %v599 = vrcp.pop %v595
      %v600 = vmul.f32 %v590, %v599
      %v601 = vrcp.pop %v598
      %v602 = vmul.f32 %v592, %v601
      %v603 = vpack.c.bf16 %v600, %v600
      %v604 = vpack.c.bf16 %v602, %v602
      %v605 = vld [vmem:[%s5] sm:$0xff]
      %v606 = vld [vmem:[%s5 + $0x8] sm:$0x1]
      %v607 = vsel %vm347, %v600, 0.0
      %v608 = vsel %vm347, %v602, 0.0
      %v609 = vsel %vm580, %v607, 0.0
      %610 = vadd.xlane.f32.xlu0 %v609
      %v611 = vpop.xlane.xlu0 %610
      %v612 = vsel %vm580, %v608, 0.0
      %613 = vadd.xlane.f32.xlu0 %v612
      %v614 = vpop.xlane.xlu0 %613
      %v615 = vlaneseq
      %v616 = vshrl.u32 %v615, 7
      %v617 = vsub.s32 0, %v616
      %v618 = vrot.slane %v605, %v617
      %v619 = vmul.f32 %v611, %v618
      %v620 = vmul.f32 %v614, %v618
      %v622 = vsel %vm580, %v603, 0
      %vm624 = vcmask 1043456
      %v626 = vsel %vm624, %v278, 0
      %628 = vmatprep.subr.bf16.mxu0 0
      %629 = vmatpush1.bf16.msra.mxu0 %v626
      %630 = vmatprep.subr.bf16.mxu0 0
      %631 = vmatpush1.bf16.msra.mxu0 0
      %632 = vmatprep.subr.bf16.mxu0 0
      %633 = vmatpush1.bf16.msra.mxu0 0
      %634 = vmatprep.subr.bf16.mxu0 0
      %635 = vmatpush1.bf16.msra.mxu0 0
      %636 = vmatprep.subr.bf16.mxu0 0
      %637 = vmatpush1.bf16.msra.mxu0 0
      %638 = vmatprep.subr.bf16.mxu0 0
      %639 = vmatpush1.bf16.msra.mxu0 0
      %640 = vmatprep.subr.bf16.mxu0 0
      %641 = vmatpush1.bf16.msra.mxu0 0
      %642 = vmatprep.subr.bf16.mxu0 0
      %643 = vmatpush1.bf16.msra.mxu0 0
      %644 = vmatprep.subr.bf16.mxu0 0
      %645 = vmatpush1.bf16.msra.mxu0 0
      %646 = vmatprep.subr.bf16.mxu0 0
      %647 = vmatpush1.bf16.msra.mxu0 0
      %648 = vmatprep.subr.bf16.mxu0 0
      %649 = vmatpush1.bf16.msra.mxu0 0
      %650 = vmatprep.subr.bf16.mxu0 0
      %651 = vmatpush1.bf16.msra.mxu0 0
      %652 = vmatprep.subr.bf16.mxu0 0
      %653 = vmatpush1.bf16.msra.mxu0 0
      %654 = vmatprep.subr.bf16.mxu0 0
      %655 = vmatpush1.bf16.msra.mxu0 0
      %656 = vmatprep.subr.bf16.mxu0 0
      %657 = vmatpush1.bf16.msra.mxu0 0
      %658 = vmatprep.subr.bf16.mxu0 0
      %659 = vmatpush1.bf16.msra.mxu0 0
      %660 = vmatprep.mubr.bf16.mxu0 0
      %661 = vmatmul.mubr.bf16.gmra.mrb[0].mxu0 %v622
      %v662 = vpop.f32.mrb[0].mxu0
      %v663 = vadd.f32 %v619, %v662
      %v664 = vpop.f32.mrb[0].mxu0
      %v665 = vpop.f32.mrb[0].mxu0
      %v666 = vpop.f32.mrb[0].mxu0
      %667 = vdwg.mxu0
      %v669 = vsel %vm580, %v604, 0
      %v672 = vsel %vm624, %v279, 0
      %674 = vmatprep.subr.bf16.mxu0 0
      %675 = vmatpush1.bf16.msra.mxu0 %v672
      %676 = vmatprep.subr.bf16.mxu0 0
      %677 = vmatpush1.bf16.msra.mxu0 0
      %678 = vmatprep.subr.bf16.mxu0 0
      %679 = vmatpush1.bf16.msra.mxu0 0
      %680 = vmatprep.subr.bf16.mxu0 0
      %681 = vmatpush1.bf16.msra.mxu0 0
      %682 = vmatprep.subr.bf16.mxu0 0
      %683 = vmatpush1.bf16.msra.mxu0 0
      %684 = vmatprep.subr.bf16.mxu0 0
      %685 = vmatpush1.bf16.msra.mxu0 0
      %686 = vmatprep.subr.bf16.mxu0 0
      %687 = vmatpush1.bf16.msra.mxu0 0
      %688 = vmatprep.subr.bf16.mxu0 0
      %689 = vmatpush1.bf16.msra.mxu0 0
      %690 = vmatprep.subr.bf16.mxu0 0
      %691 = vmatpush1.bf16.msra.mxu0 0
      %692 = vmatprep.subr.bf16.mxu0 0
      %693 = vmatpush1.bf16.msra.mxu0 0
      %694 = vmatprep.subr.bf16.mxu0 0
      %695 = vmatpush1.bf16.msra.mxu0 0
      %696 = vmatprep.subr.bf16.mxu0 0
      %697 = vmatpush1.bf16.msra.mxu0 0
      %698 = vmatprep.subr.bf16.mxu0 0
      %699 = vmatpush1.bf16.msra.mxu0 0
      %700 = vmatprep.subr.bf16.mxu0 0
      %701 = vmatpush1.bf16.msra.mxu0 0
      %702 = vmatprep.subr.bf16.mxu0 0
      %703 = vmatpush1.bf16.msra.mxu0 0
      %704 = vmatprep.subr.bf16.mxu0 0
      %705 = vmatpush1.bf16.msra.mxu0 0
      %706 = vmatprep.mubr.bf16.mxu0 0
      %707 = vmatmul.mubr.bf16.gmra.mrb[0].mxu0 %v669
      %v708 = vpop.f32.mrb[0].mxu0
      %v709 = vadd.f32 %v620, %v708
      %v710 = vpop.f32.mrb[0].mxu0
      %v711 = vpop.f32.mrb[0].mxu0
      %v712 = vpop.f32.mrb[0].mxu0
      %713 = vdwg.mxu0
      %v714 = vsel %vm454, %v600, 0.0
      %v715 = vsel %vm454, %v602, 0.0
      %v716 = vsel %vm580, %v714, 0.0
      %717 = vadd.xlane.f32.xlu0 %v716
      %v718 = vpop.xlane.xlu0 %717
      %v719 = vsel %vm580, %v715, 0.0
      %720 = vadd.xlane.f32.xlu0 %v719
      %v721 = vpop.xlane.xlu0 %720
      %v722 = vlaneseq
      %v723 = vshrl.u32 %v722, 7
      %v724 = vsub.s32 1, %v723
      %v725 = vrot.slane %v605, %v724
      %v726 = vmul.f32 %v718, %v725
      %v727 = vmul.f32 %v721, %v725
      %v728 = vadd.f32 %v663, %v726
      %v729 = vadd.f32 %v709, %v727
      %v730 = vsel %vm469, %v600, 0.0
      %v731 = vsel %vm469, %v602, 0.0
      %v732 = vsel %vm580, %v730, 0.0
      %733 = vadd.xlane.f32.xlu0 %v732
      %v734 = vpop.xlane.xlu0 %733
      %v735 = vsel %vm580, %v731, 0.0
      %736 = vadd.xlane.f32.xlu0 %v735
      %v737 = vpop.xlane.xlu0 %736
      %v738 = vlaneseq
      %v739 = vshrl.u32 %v738, 7
      %v740 = vsub.s32 2, %v739
      %v741 = vrot.slane %v605, %v740
      %v742 = vmul.f32 %v734, %v741
      %v743 = vmul.f32 %v737, %v741
      %v744 = vadd.f32 %v728, %v742
      %v745 = vadd.f32 %v729, %v743
      %v746 = vsel %vm484, %v600, 0.0
      %v747 = vsel %vm484, %v602, 0.0
      %v748 = vsel %vm580, %v746, 0.0
      %749 = vadd.xlane.f32.xlu0 %v748
      %v750 = vpop.xlane.xlu0 %749
      %v751 = vsel %vm580, %v747, 0.0
      %752 = vadd.xlane.f32.xlu0 %v751
      %v753 = vpop.xlane.xlu0 %752
      %v754 = vlaneseq
      %v755 = vshrl.u32 %v754, 7
      %v756 = vsub.s32 3, %v755
      %v757 = vrot.slane %v605, %v756
      %v758 = vmul.f32 %v750, %v757
      %v759 = vmul.f32 %v753, %v757
      %v760 = vadd.f32 %v744, %v758
      %v761 = vadd.f32 %v745, %v759
      %v762 = vsel %vm499, %v600, 0.0
      %v763 = vsel %vm499, %v602, 0.0
      %v764 = vsel %vm580, %v762, 0.0
      %765 = vadd.xlane.f32.xlu0 %v764
      %v766 = vpop.xlane.xlu0 %765
      %v767 = vsel %vm580, %v763, 0.0
      %768 = vadd.xlane.f32.xlu0 %v767
      %v769 = vpop.xlane.xlu0 %768
      %v770 = vlaneseq
      %v771 = vshrl.u32 %v770, 7
      %v772 = vsub.s32 4, %v771
      %v773 = vrot.slane %v605, %v772
      %v774 = vmul.f32 %v766, %v773
      %v775 = vmul.f32 %v769, %v773
      %v776 = vadd.f32 %v760, %v774
      %v777 = vadd.f32 %v761, %v775
      %v778 = vsel %vm514, %v600, 0.0
      %v779 = vsel %vm514, %v602, 0.0
      %v780 = vsel %vm580, %v778, 0.0
      %781 = vadd.xlane.f32.xlu0 %v780
      %v782 = vpop.xlane.xlu0 %781
      %v783 = vsel %vm580, %v779, 0.0
      %784 = vadd.xlane.f32.xlu0 %v783
      %v785 = vpop.xlane.xlu0 %784
      %v786 = vlaneseq
      %v787 = vshrl.u32 %v786, 7
      %v788 = vsub.s32 5, %v787
      %v789 = vrot.slane %v605, %v788
      %v790 = vmul.f32 %v782, %v789
      %v791 = vmul.f32 %v785, %v789
      %v792 = vadd.f32 %v776, %v790
      %v793 = vadd.f32 %v777, %v791
      %v794 = vsel %vm529, %v600, 0.0
      %v795 = vsel %vm529, %v602, 0.0
      %v796 = vsel %vm580, %v794, 0.0
      %797 = vadd.xlane.f32.xlu0 %v796
      %v798 = vpop.xlane.xlu0 %797
      %v799 = vsel %vm580, %v795, 0.0
      %800 = vadd.xlane.f32.xlu0 %v799
      %v801 = vpop.xlane.xlu0 %800
      %v802 = vlaneseq
      %v803 = vshrl.u32 %v802, 7
      %v804 = vsub.s32 6, %v803
      %v805 = vrot.slane %v605, %v804
      %v806 = vmul.f32 %v798, %v805
      %v807 = vmul.f32 %v801, %v805
      %v808 = vadd.f32 %v792, %v806
      %v809 = vadd.f32 %v793, %v807
      %v810 = vsel %vm544, %v600, 0.0
      %v811 = vsel %vm544, %v602, 0.0
      %v812 = vsel %vm580, %v810, 0.0
      %813 = vadd.xlane.f32.xlu0 %v812
      %v814 = vpop.xlane.xlu0 %813
      %v815 = vsel %vm580, %v811, 0.0
      %816 = vadd.xlane.f32.xlu0 %v815
      %v817 = vpop.xlane.xlu0 %816
      %v818 = vlaneseq
      %v819 = vshrl.u32 %v818, 7
      %v820 = vsub.s32 7, %v819
      %v821 = vrot.slane %v605, %v820
      %v822 = vmul.f32 %v814, %v821
      %v823 = vmul.f32 %v817, %v821
      %v824 = vadd.f32 %v808, %v822
      %v825 = vadd.f32 %v809, %v823
      %v826 = vsel %vm559, %v600, 0.0
      %v827 = vsel %vm559, %v602, 0.0
      %v828 = vsel %vm580, %v826, 0.0
      %829 = vadd.xlane.f32.xlu0 %v828
      %v830 = vpop.xlane.xlu0 %829
      %v831 = vsel %vm580, %v827, 0.0
      %832 = vadd.xlane.f32.xlu0 %v831
      %v833 = vpop.xlane.xlu0 %832
      %v834 = vlaneseq
      %v835 = vshrl.u32 %v834, 7
      %v836 = vsub.s32 0, %v835
      %v837 = vrot.slane %v606, %v836
      %v838 = vmul.f32 %v830, %v837
      %v839 = vmul.f32 %v833, %v837
      %v840 = vadd.f32 %v824, %v838
      %v841 = vadd.f32 %v825, %v839
      %v842 = vpack.c.bf16 %v840, %v840
      %v843 = vpack.c.bf16 %v841, %v841
      %vm844 = vcmask 125952
      %845 = vst.msk [vmem:[%s271] sm:$0xf] %vm844, %v842
      %846 = vst.msk [vmem:[%s271 + $0x4] sm:$0xf] %vm844, %v843
      %p847 = scmp.lt.s32.totalorder %s23, 1
      %s848 = scalar_select %p847, %s23, 1
      %s849 = smul.addr %s848, 2
      %s850 = smul.addr %s849, 4
      %s851 = scalar_lea.vmem %s6, %s850
      // Predicated region
      $region41: #{forward.9} parent=39 // pred_check
        %p852 = pneg %p161
      $region42: #{forward.9} parent=39 // pred_check_branch
        %854 = sbr.rel (%p852) target = $region44
      $region43: #{forward.9} parent=39 // pred_region
        _
      $region44: #{forward.9} parent=39 // pred_fallthru
        _
    $region40: #{forward.9} parent=5 // pred_fallthru
      _
    %p855 = scmp.le.s32.totalorder 2, %s18
    // Predicated region
    $region45: #{forward.9} parent=5 // pred_check
      %p856 = pneg %p855
    $region46: #{forward.9} parent=5 // pred_check_branch
      %858 = sbr.rel (%p856) target = $region48
    $region47: #{forward.9} parent=5 // pred_region
      %s859 = ssub.s32 %s18, 2
      // Predicated region
      $region49: #{forward.9} parent=47 // pred_check
        %p860 = pneg %p167
      $region50: #{forward.9} parent=47 // pred_check_branch
        %862 = sbr.rel (%p860) target = $region52
      $region51: #{forward.9} parent=47 // pred_region
        %p863 = scmp.lt.s32.totalorder %s24, 1
        %s864 = scalar_select %p863, %s24, 1
        %s865 = smul.addr %s864, 2
        %s866 = smul.addr %s865, 4
        %s867 = scalar_lea.vmem %s6, %s866
      $region52: #{forward.9} parent=47 // pred_fallthru
        _
    $region48: #{forward.9} parent=5 // pred_fallthru
      _
  $region6: #{forward.9} parent=0 // loop_footer
    %s22 = sadd.s32 1, %s18
  $region7: #{forward.9} parent=0 // loop_footer_branch
    %17 = sbr.rel target = $region3
  $region8: #{forward.9} parent=0 // loop_exit
    _

// kernel: forward.11
$region0: #{forward.11}
  #allocation0 [shape = 'u32[]', space=smem, size = 0x4, offset = 0x4, fixed_abs, tag = 'smem constant byte address 0x4 - core index']
  #allocation1 [shape = 'u32[144,128]{1,0:T(1,128)}', space=vmem, size = 0x12000, scoped, tag = 'internal scratch']
  #allocation2 [shape = 's32[1]{0}', space=sflag, size = 0x4, scoped, tag = 'scoped memory for forward.11']
  #allocation3 [shape = 'u8[512]{0}', space=smem, size = 0x200, scoped, tag = 'prefetched SMEM operand 0']
  %s0 = inlined_call_operand.vmem [shape: s32[2], index: 0, kind: input, shape index: {}]
  %s1 = inlined_call_operand.vmem [shape: f32[2,8,32], index: 1, kind: input, shape index: {}]
  %s2 = inlined_call_operand.vmem [shape: bf16[3,32,64], index: 2, kind: input, shape index: {}]
  %s3 = inlined_call_operand.vmem [shape: f32[1,64], index: 3, kind: input, shape index: {}]
  %s4 = inlined_call_operand.vmem [shape: bf16[3,64,32], index: 4, kind: input, shape index: {}]
  %s5 = inlined_call_operand.vmem [shape: f32[1,32], index: 5, kind: input, shape index: {}]
  %s6 = inlined_call_operand.vmem [shape: f32[1,32], index: 6, kind: input, shape index: {}]
  %s7 = inlined_call_operand.vmem [shape: f32[1,32], index: 7, kind: input, shape index: {}]
  %s8 = inlined_call_operand.vmem [shape: f32[2,8,32], index: 8, kind: output, shape index: {}]
  %s9 = sld [smem:[#allocation0]]
  $region61: #{forward.11} parent=0
    _
  %s11 = ssub.s32 1, %s9
  %s12 = scalar_select 0, %s11, %s9
  %s13 = sshll.u32 %s0, 4
  %s14 = int_to_ptr.vmem [resolvable:$true] %s13
  %16 = dma.vmem_to_smem %s14, 16, [#allocation3], [#allocation2]
  %17 = dma.done [#allocation2], 16
  %18 = sfence
  loop: start=0, step=1, limit=4
  $region2: #{forward.11} parent=0 // loop_pre_header
    _
  $region3: #{forward.11} parent=0 // loop_header
    %s20 = sphi 0, %s24
    %p21 = scmp.ge.s32.totalorder %s20, 4
    %s30 = sphi 0, %s32
    %s33 = sphi 0, %s30
    %s34 = sphi 0, %s33
    %s50 = sphi 0, %s34
    %s54 = sphi 0, %s54
    %s56 = sphi 0, %s54
    %s57 = sphi 0, %s56
    %s71 = sphi 0, %s57
    %s75 = sphi 0, %s75
    %s77 = sphi 0, %s75
    %s78 = sphi 0, %s77
    %s92 = sphi 0, %s78
    %s96 = sphi 0, %s96
    %s98 = sphi 0, %s96
    %s99 = sphi 0, %s98
    %s113 = sphi 0, %s99
    %s117 = sphi 0, %s117
    %s119 = sphi 0, %s117
    %s120 = sphi 0, %s119
    %s134 = sphi 0, %s120
    %s138 = sphi 0, %s138
    %s140 = sphi 0, %s138
    %s141 = sphi 0, %s140
    %s155 = sphi 0, %s141
    %s159 = sphi 0, %s159
    %s161 = sphi 0, %s159
    %s162 = sphi 0, %s161
    %s176 = sphi 0, %s162
    %s182 = sphi 0, %s184
    %s185 = sphi 0, %s182
    %s186 = sphi 0, %s185
    %s202 = sphi 0, %s186
  $region4: #{forward.11} parent=0 // loop_header_branch
    %23 = sbr.rel (%p21) target = $region8
  $region5: #{forward.11} parent=0 // loop_body
    %s25 = ssub.s32 %s20, 1
    %s26 = ssub.s32 %s20, 2
    %s27 = sadd.s32 %s20, 1
    %s28 = ssub.s32 %s20, %s27
    %p29 = scmp.eq.s32.totalorder %s28, 0
    %s31 = sadd.s32 %s30, 1
    %s32 = scalar_select %p29, %s30, %s31
    %p35 = pneg %p29
    %p36 = scmp.eq.s32.totalorder %s20, 1
    %p37 = por %p35, %p36
    %p38 = scmp.ne.s32.totalorder %s30, %s33
    %p39 = scmp.eq.s32.totalorder %s20, 0
    %p40 = por %p38, %p39
    %p41 = scmp.ne.s32.totalorder %s30, %s33
    %p42 = scmp.eq.s32.totalorder %s25, 1
    %p43 = por %p41, %p42
    %p44 = scmp.ne.s32.totalorder %s33, %s34
    %p45 = scmp.eq.s32.totalorder %s25, 0
    %p46 = por %p44, %p45
    %p47 = scmp.ne.s32.totalorder %s33, %s34
    %p48 = scmp.eq.s32.totalorder %s26, 1
    %p49 = por %p47, %p48
    %p51 = scmp.ne.s32.totalorder %s34, %s50
    %p52 = scmp.eq.s32.totalorder %s26, 0
    %p53 = por %p51, %p52
    %s55 = sadd.s32 %s54, 1
    %p58 = scmp.eq.s32.totalorder %s20, 1
    %p59 = scmp.ne.s32.totalorder %s54, %s56
    %p60 = scmp.eq.s32.totalorder %s20, 0
    %p61 = por %p59, %p60
    %p62 = scmp.ne.s32.totalorder %s54, %s56
    %p63 = scmp.eq.s32.totalorder %s25, 1
    %p64 = por %p62, %p63
    %p65 = scmp.ne.s32.totalorder %s56, %s57
    %p66 = scmp.eq.s32.totalorder %s25, 0
    %p67 = por %p65, %p66
    %p68 = scmp.ne.s32.totalorder %s56, %s57
    %p69 = scmp.eq.s32.totalorder %s26, 1
    %p70 = por %p68, %p69
    %p72 = scmp.ne.s32.totalorder %s57, %s71
    %p73 = scmp.eq.s32.totalorder %s26, 0
    %p74 = por %p72, %p73
    %s76 = sadd.s32 %s75, 1
    %p79 = scmp.eq.s32.totalorder %s20, 1
    %p80 = scmp.ne.s32.totalorder %s75, %s77
    %p81 = scmp.eq.s32.totalorder %s20, 0
    %p82 = por %p80, %p81
    %p83 = scmp.ne.s32.totalorder %s75, %s77
    %p84 = scmp.eq.s32.totalorder %s25, 1
    %p85 = por %p83, %p84
    %p86 = scmp.ne.s32.totalorder %s77, %s78
    %p87 = scmp.eq.s32.totalorder %s25, 0
    %p88 = por %p86, %p87
    %p89 = scmp.ne.s32.totalorder %s77, %s78
    %p90 = scmp.eq.s32.totalorder %s26, 1
    %p91 = por %p89, %p90
    %p93 = scmp.ne.s32.totalorder %s78, %s92
    %p94 = scmp.eq.s32.totalorder %s26, 0
    %p95 = por %p93, %p94
    %s97 = sadd.s32 %s96, 1
    %p100 = scmp.eq.s32.totalorder %s20, 1
    %p101 = scmp.ne.s32.totalorder %s96, %s98
    %p102 = scmp.eq.s32.totalorder %s20, 0
    %p103 = por %p101, %p102
    %p104 = scmp.ne.s32.totalorder %s96, %s98
    %p105 = scmp.eq.s32.totalorder %s25, 1
    %p106 = por %p104, %p105
    %p107 = scmp.ne.s32.totalorder %s98, %s99
    %p108 = scmp.eq.s32.totalorder %s25, 0
    %p109 = por %p107, %p108
    %p110 = scmp.ne.s32.totalorder %s98, %s99
    %p111 = scmp.eq.s32.totalorder %s26, 1
    %p112 = por %p110, %p111
    %p114 = scmp.ne.s32.totalorder %s99, %s113
    %p115 = scmp.eq.s32.totalorder %s26, 0
    %p116 = por %p114, %p115
    %s118 = sadd.s32 %s117, 1
    %p121 = scmp.eq.s32.totalorder %s20, 1
    %p122 = scmp.ne.s32.totalorder %s117, %s119
    %p123 = scmp.eq.s32.totalorder %s20, 0
    %p124 = por %p122, %p123
    %p125 = scmp.ne.s32.totalorder %s117, %s119
    %p126 = scmp.eq.s32.totalorder %s25, 1
    %p127 = por %p125, %p126
    %p128 = scmp.ne.s32.totalorder %s119, %s120
    %p129 = scmp.eq.s32.totalorder %s25, 0
    %p130 = por %p128, %p129
    %p131 = scmp.ne.s32.totalorder %s119, %s120
    %p132 = scmp.eq.s32.totalorder %s26, 1
    %p133 = por %p131, %p132
    %p135 = scmp.ne.s32.totalorder %s120, %s134
    %p136 = scmp.eq.s32.totalorder %s26, 0
    %p137 = por %p135, %p136
    %s139 = sadd.s32 %s138, 1
    %p142 = scmp.eq.s32.totalorder %s20, 1
    %p143 = scmp.ne.s32.totalorder %s138, %s140
    %p144 = scmp.eq.s32.totalorder %s20, 0
    %p145 = por %p143, %p144
    %p146 = scmp.ne.s32.totalorder %s138, %s140
    %p147 = scmp.eq.s32.totalorder %s25, 1
    %p148 = por %p146, %p147
    %p149 = scmp.ne.s32.totalorder %s140, %s141
    %p150 = scmp.eq.s32.totalorder %s25, 0
    %p151 = por %p149, %p150
    %p152 = scmp.ne.s32.totalorder %s140, %s141
    %p153 = scmp.eq.s32.totalorder %s26, 1
    %p154 = por %p152, %p153
    %p156 = scmp.ne.s32.totalorder %s141, %s155
    %p157 = scmp.eq.s32.totalorder %s26, 0
    %p158 = por %p156, %p157
    %s160 = sadd.s32 %s159, 1
    %p163 = scmp.eq.s32.totalorder %s20, 1
    %p164 = scmp.ne.s32.totalorder %s159, %s161
    %p165 = scmp.eq.s32.totalorder %s20, 0
    %p166 = por %p164, %p165
    %p167 = scmp.ne.s32.totalorder %s159, %s161
    %p168 = scmp.eq.s32.totalorder %s25, 1
    %p169 = por %p167, %p168
    %p170 = scmp.ne.s32.totalorder %s161, %s162
    %p171 = scmp.eq.s32.totalorder %s25, 0
    %p172 = por %p170, %p171
    %p173 = scmp.ne.s32.totalorder %s161, %s162
    %p174 = scmp.eq.s32.totalorder %s26, 1
    %p175 = por %p173, %p174
    %p177 = scmp.ne.s32.totalorder %s162, %s176
    %p178 = scmp.eq.s32.totalorder %s26, 0
    %p179 = por %p177, %p178
    %s180 = ssub.s32 %s20, %s27
    %p181 = scmp.eq.s32.totalorder %s180, 0
    %s183 = sadd.s32 %s182, 1
    %s184 = scalar_select %p181, %s182, %s183
    %p187 = pneg %p181
    %p188 = scmp.eq.s32.totalorder %s20, 1
    %p189 = por %p187, %p188
    %p190 = scmp.ne.s32.totalorder %s182, %s185
    %p191 = scmp.eq.s32.totalorder %s20, 0
    %p192 = por %p190, %p191
    %p193 = scmp.ne.s32.totalorder %s182, %s185
    %p194 = scmp.eq.s32.totalorder %s25, 1
    %p195 = por %p193, %p194
    %p196 = scmp.ne.s32.totalorder %s185, %s186
    %p197 = scmp.eq.s32.totalorder %s25, 0
    %p198 = por %p196, %p197
    %p199 = scmp.ne.s32.totalorder %s185, %s186
    %p200 = scmp.eq.s32.totalorder %s26, 1
    %p201 = por %p199, %p200
    %p203 = scmp.ne.s32.totalorder %s186, %s202
    %p204 = scmp.eq.s32.totalorder %s26, 0
    %p205 = por %p203, %p204
    %p206 = scmp.le.s32.totalorder 1, %s20
    %p207 = scmp.lt.s32.totalorder %s20, 3
    %p208 = pnand %p206, %p207
    %p209 = pneg %p208
    // Predicated region
    $region9: #{forward.11} parent=5 // pred_check
      _
    $region10: #{forward.11} parent=5 // pred_check_branch
      %211 = sbr.rel (%p208) target = $region12
    $region11: #{forward.11} parent=5 // pred_region
      %s212 = ssub.s32 %s20, 1
      // Predicated region
      $region13: #{forward.11} parent=11 // pred_check
        %p213 = pneg %p67
      $region14: #{forward.11} parent=11 // pred_check_branch
        %215 = sbr.rel (%p213) target = $region16
      $region15: #{forward.11} parent=11 // pred_region
        _
      $region16: #{forward.11} parent=11 // pred_fallthru
        _
      // Predicated region
      $region17: #{forward.11} parent=11 // pred_check
        %p216 = pneg %p88
      $region18: #{forward.11} parent=11 // pred_check_branch
        %218 = sbr.rel (%p216) target = $region20
      $region19: #{forward.11} parent=11 // pred_region
        _
      $region20: #{forward.11} parent=11 // pred_fallthru
        _
      // Predicated region
      $region21: #{forward.11} parent=11 // pred_check
        %p219 = pneg %p109
      $region22: #{forward.11} parent=11 // pred_check_branch
        %221 = sbr.rel (%p219) target = $region24
      $region23: #{forward.11} parent=11 // pred_region
        _
      $region24: #{forward.11} parent=11 // pred_fallthru
        _
      // Predicated region
      $region25: #{forward.11} parent=11 // pred_check
        %p222 = pneg %p130
      $region26: #{forward.11} parent=11 // pred_check_branch
        %224 = sbr.rel (%p222) target = $region28
      $region27: #{forward.11} parent=11 // pred_region
        _
      $region28: #{forward.11} parent=11 // pred_fallthru
        _
      // Predicated region
      $region29: #{forward.11} parent=11 // pred_check
        %p225 = pneg %p151
      $region30: #{forward.11} parent=11 // pred_check_branch
        %227 = sbr.rel (%p225) target = $region32
      $region31: #{forward.11} parent=11 // pred_region
        _
      $region32: #{forward.11} parent=11 // pred_fallthru
        _
      // Predicated region
      $region33: #{forward.11} parent=11 // pred_check
        %p228 = pneg %p172
      $region34: #{forward.11} parent=11 // pred_check_branch
        %230 = sbr.rel (%p228) target = $region36
      $region35: #{forward.11} parent=11 // pred_region
        _
      $region36: #{forward.11} parent=11 // pred_fallthru
        _
    $region12: #{forward.11} parent=5 // pred_fallthru
      _
    %p231 = scmp.lt.s32.totalorder %s20, 2
    // Predicated region
    $region37: #{forward.11} parent=5 // pred_check
      %p232 = pneg %p231
    $region38: #{forward.11} parent=5 // pred_check_branch
      %234 = sbr.rel (%p232) target = $region40
    $region39: #{forward.11} parent=5 // pred_region
      // Predicated region
      $region41: #{forward.11} parent=39 // pred_check
        %p235 = pneg %p40
      $region42: #{forward.11} parent=39 // pred_check_branch
        %237 = sbr.rel (%p235) target = $region44
      $region43: #{forward.11} parent=39 // pred_region
        %p238 = scmp.lt.s32.totalorder %s20, 1
        %s239 = scalar_select %p238, %s20, 1
        %s240 = smul.addr %s239, 8
        %s241 = scalar_lea.vmem %s1, %s240
      $region44: #{forward.11} parent=39 // pred_fallthru
        _
    $region40: #{forward.11} parent=5 // pred_fallthru
      _
    %p242 = scmp.le.s32.totalorder 1, %s20
    %p243 = scmp.lt.s32.totalorder %s20, 3
    %p244 = pnand %p242, %p243
    %p245 = pneg %p244
    // Predicated region
    $region45: #{forward.11} parent=5 // pred_check
      _
    $region46: #{forward.11} parent=5 // pred_check_branch
      %247 = sbr.rel (%p244) target = $region48
    $region47: #{forward.11} parent=5 // pred_region
      %s248 = ssub.s32 %s20, 1
      %p249 = scmp.lt.s32.totalorder %s25, 1
      %s250 = scalar_select %p249, %s25, 1
      %s251 = smul.addr %s250, 8
      %s252 = scalar_lea.vmem %s1, %s251
      %p253 = pneg %p46
      %p254 = pneg %p43
      %p255 = pneg %p67
      %p256 = pneg %p64
      %p257 = pneg %p88
      %p258 = pneg %p85
      %p259 = pneg %p109
      %p260 = pneg %p106
      %p261 = pneg %p130
      %p262 = pneg %p127
      %p263 = pneg %p151
      %p264 = pneg %p148
      %p265 = pneg %p172
      %p266 = pneg %p169
      %p267 = pneg %p198
      %p268 = pneg %p195
      %p269 = scmp.lt.s32.totalorder %s25, 1
      %s270 = scalar_select %p269, %s25, 1
      %s271 = smul.addr %s270, 8
      %s272 = scalar_lea.vmem %s8, %s271
      %p273 = scmp.lt.s32.totalorder %s25, 1
      %s274 = scalar_select %p273, %s25, 1
      %s275 = smul.addr %s274, 8
      %s276 = scalar_lea.vmem %s1, %s275
      %p277 = scmp.lt.s32.totalorder %s25, 1
      %s278 = scalar_select %p277, %s25, 1
      %s279 = smul.addr %s278, 8
      %s280 = scalar_lea.vmem %s8, %s279
      %s282 = sld [smem:[#allocation3 + %s25]]
      %v283 = vld [vmem:[%s276] sm:$0xff]
      %v284 = vlaneseq
      %v285 = vshrl.u32 %v284, 7
      %v286 = vrot.slane %v283, 7
      %v287 = vadd.s32 %v285, 4294967295
      %vm288 = vcmp.ge.s32.totalorder %v287, 0
      %v289 = vstv %s282
      %vm290 = vcmp.lt.s32.totalorder %v287, %v289
      %vm291 = vmand %vm288, %vm290
      %v292 = vsel %vm291, 1, 0
      %vm293 = vcmp.eq.s32.totalorder %v292, 1
      %v294 = vsel %vm293, %v286, 0.0
      %v295 = vpack.c.bf16 %v294, %v294
      %v296 = vld [vmem:[%s2] sm:$0xf]
      %v297 = vld [vmem:[%s2 + $0x4] sm:$0xf]
      %v298 = vld [vmem:[%s2 + $0x8] sm:$0xf]
      %v299 = vld [vmem:[%s2 + $0xc] sm:$0xf]
      %vm300 = vcmp.ge.s32.totalorder %v285, 0
      %vm301 = vcmp.lt.s32.totalorder %v285, %v289
      %vm302 = vmand %vm300, %vm301
      %v303 = vsel %vm302, 1, 0
      %vm304 = vcmp.eq.s32.totalorder %v303, 1
      %v305 = vsel %vm304, %v283, 0.0
      %v306 = vpack.c.bf16 %v305, %v305
      %s307 = scalar_lea.vmem %s2, 16
      %v308 = vld [vmem:[%s307] sm:$0xf]
      %v309 = vld [vmem:[%s307 + $0x4] sm:$0xf]
      %v310 = vld [vmem:[%s307 + $0x8] sm:$0xf]
      %v311 = vld [vmem:[%s307 + $0xc] sm:$0xf]
      %v316 = vunpack.c.l.b16 %v308
      %v317 = vunpack.c.l.b16 %v309
      %v318 = vunpack.c.l.b16 %v310
      %v319 = vunpack.c.l.b16 %v311
      %v320 = vpack.c.b16 %v317, %v316
      %v321 = vpack.c.b16 %v319, %v318
      %vm324 = vcmask 261120
      %v326 = vsel %vm324, %v306, 0
      %328 = vmatprep.subr.bf16.mxu0 0
      %329 = vmatpush1.bf16.msra.mxu0 %v320
      %330 = vmatprep.subr.bf16.mxu0 0
      %331 = vmatpush1.bf16.msra.mxu0 %v321
      %332 = vmatprep.subr.bf16.mxu0 0
      %333 = vmatpush1.bf16.msra.mxu0 0
      %334 = vmatprep.subr.bf16.mxu0 0
      %335 = vmatpush1.bf16.msra.mxu0 0
      %336 = vmatprep.subr.bf16.mxu0 0
      %337 = vmatpush1.bf16.msra.mxu0 0
      %338 = vmatprep.subr.bf16.mxu0 0
      %339 = vmatpush1.bf16.msra.mxu0 0
      %340 = vmatprep.subr.bf16.mxu0 0
      %341 = vmatpush1.bf16.msra.mxu0 0
      %342 = vmatprep.subr.bf16.mxu0 0
      %343 = vmatpush1.bf16.msra.mxu0 0
      %344 = vmatprep.subr.bf16.mxu0 0
      %345 = vmatpush1.bf16.msra.mxu0 0
      %346 = vmatprep.subr.bf16.mxu0 0
      %347 = vmatpush1.bf16.msra.mxu0 0
      %348 = vmatprep.subr.bf16.mxu0 0
      %349 = vmatpush1.bf16.msra.mxu0 0
      %350 = vmatprep.subr.bf16.mxu0 0
      %351 = vmatpush1.bf16.msra.mxu0 0
      %352 = vmatprep.subr.bf16.mxu0 0
      %353 = vmatpush1.bf16.msra.mxu0 0
      %354 = vmatprep.subr.bf16.mxu0 0
      %355 = vmatpush1.bf16.msra.mxu0 0
      %356 = vmatprep.subr.bf16.mxu0 0
      %357 = vmatpush1.bf16.msra.mxu0 0
      %358 = vmatprep.subr.bf16.mxu0 0
      %359 = vmatpush1.bf16.msra.mxu0 0
      %360 = vmatprep.mubr.bf16.mxu0 0
      %361 = vmatmul.mubr.bf16.gmra.mrb[0].mxu0 %v326
      %v362 = vpop.f32.mrb[0].mxu0
      %v363 = vadd.f32 0.0, %v362
      %v364 = vpop.f32.mrb[0].mxu0
      %v365 = vpop.f32.mrb[0].mxu0
      %v366 = vpop.f32.mrb[0].mxu0
      %367 = vdwg.mxu0
      %v372 = vunpack.c.l.b16 %v296
      %v373 = vunpack.c.l.b16 %v297
      %v374 = vunpack.c.l.b16 %v298
      %v375 = vunpack.c.l.b16 %v299
      %v376 = vpack.c.b16 %v373, %v372
      %v377 = vpack.c.b16 %v375, %v374
      %v381 = vsel %vm324, %v295, 0
      %383 = vmatprep.subr.bf16.mxu0 0
      %384 = vmatpush1.bf16.msra.mxu0 %v376
      %385 = vmatprep.subr.bf16.mxu0 0
      %386 = vmatpush1.bf16.msra.mxu0 %v377
      %387 = vmatprep.subr.bf16.mxu0 0
      %388 = vmatpush1.bf16.msra.mxu0 0
      %389 = vmatprep.subr.bf16.mxu0 0
      %390 = vmatpush1.bf16.msra.mxu0 0
      %391 = vmatprep.subr.bf16.mxu0 0
      %392 = vmatpush1.bf16.msra.mxu0 0
      %393 = vmatprep.subr.bf16.mxu0 0
      %394 = vmatpush1.bf16.msra.mxu0 0
      %395 = vmatprep.subr.bf16.mxu0 0
      %396 = vmatpush1.bf16.msra.mxu0 0
      %397 = vmatprep.subr.bf16.mxu0 0
      %398 = vmatpush1.bf16.msra.mxu0 0
      %399 = vmatprep.subr.bf16.mxu0 0
      %400 = vmatpush1.bf16.msra.mxu0 0
      %401 = vmatprep.subr.bf16.mxu0 0
      %402 = vmatpush1.bf16.msra.mxu0 0
      %403 = vmatprep.subr.bf16.mxu0 0
      %404 = vmatpush1.bf16.msra.mxu0 0
      %405 = vmatprep.subr.bf16.mxu0 0
      %406 = vmatpush1.bf16.msra.mxu0 0
      %407 = vmatprep.subr.bf16.mxu0 0
      %408 = vmatpush1.bf16.msra.mxu0 0
      %409 = vmatprep.subr.bf16.mxu0 0
      %410 = vmatpush1.bf16.msra.mxu0 0
      %411 = vmatprep.subr.bf16.mxu0 0
      %412 = vmatpush1.bf16.msra.mxu0 0
      %413 = vmatprep.subr.bf16.mxu0 0
      %414 = vmatpush1.bf16.msra.mxu0 0
      %415 = vmatprep.mubr.bf16.mxu0 0
      %416 = vmatmul.mubr.bf16.gmra.mrb[0].mxu0 %v381
      %v417 = vpop.f32.mrb[0].mxu0
      %v418 = vadd.f32 %v363, %v417
      %v419 = vpop.f32.mrb[0].mxu0
      %v420 = vpop.f32.mrb[0].mxu0
      %v421 = vpop.f32.mrb[0].mxu0
      %422 = vdwg.mxu0
      %v423 = vrot.slane %v283, 1
      %v424 = vadd.s32 %v285, 1
      %vm425 = vcmp.ge.s32.totalorder %v424, 0
      %vm426 = vcmp.lt.s32.totalorder %v424, %v289
      %vm427 = vmand %vm425, %vm426
      %v428 = vsel %vm427, 1, 0
      %vm429 = vcmp.eq.s32.totalorder %v428, 1
      %v430 = vsel %vm429, %v423, 0.0
      %v431 = vpack.c.bf16 %v430, %v430
      %s432 = scalar_lea.vmem %s2, 32
      %v433 = vld [vmem:[%s432] sm:$0xf]
      %v434 = vld [vmem:[%s432 + $0x4] sm:$0xf]
      %v435 = vld [vmem:[%s432 + $0x8] sm:$0xf]
      %v436 = vld [vmem:[%s432 + $0xc] sm:$0xf]
      %v441 = vunpack.c.l.b16 %v433
      %v442 = vunpack.c.l.b16 %v434
      %v443 = vunpack.c.l.b16 %v435
      %v444 = vunpack.c.l.b16 %v436
      %v445 = vpack.c.b16 %v442, %v441
      %v446 = vpack.c.b16 %v444, %v443
      %v450 = vsel %vm324, %v431, 0
      %452 = vmatprep.subr.bf16.mxu0 0
      %453 = vmatpush1.bf16.msra.mxu0 %v445
      %454 = vmatprep.subr.bf16.mxu0 0
      %455 = vmatpush1.bf16.msra.mxu0 %v446
      %456 = vmatprep.subr.bf16.mxu0 0
      %457 = vmatpush1.bf16.msra.mxu0 0
      %458 = vmatprep.subr.bf16.mxu0 0
      %459 = vmatpush1.bf16.msra.mxu0 0
      %460 = vmatprep.subr.bf16.mxu0 0
      %461 = vmatpush1.bf16.msra.mxu0 0
      %462 = vmatprep.subr.bf16.mxu0 0
      %463 = vmatpush1.bf16.msra.mxu0 0
      %464 = vmatprep.subr.bf16.mxu0 0
      %465 = vmatpush1.bf16.msra.mxu0 0
      %466 = vmatprep.subr.bf16.mxu0 0
      %467 = vmatpush1.bf16.msra.mxu0 0
      %468 = vmatprep.subr.bf16.mxu0 0
      %469 = vmatpush1.bf16.msra.mxu0 0
      %470 = vmatprep.subr.bf16.mxu0 0
      %471 = vmatpush1.bf16.msra.mxu0 0
      %472 = vmatprep.subr.bf16.mxu0 0
      %473 = vmatpush1.bf16.msra.mxu0 0
      %474 = vmatprep.subr.bf16.mxu0 0
      %475 = vmatpush1.bf16.msra.mxu0 0
      %476 = vmatprep.subr.bf16.mxu0 0
      %477 = vmatpush1.bf16.msra.mxu0 0
      %478 = vmatprep.subr.bf16.mxu0 0
      %479 = vmatpush1.bf16.msra.mxu0 0
      %480 = vmatprep.subr.bf16.mxu0 0
      %481 = vmatpush1.bf16.msra.mxu0 0
      %482 = vmatprep.subr.bf16.mxu0 0
      %483 = vmatpush1.bf16.msra.mxu0 0
      %484 = vmatprep.mubr.bf16.mxu0 0
      %485 = vmatmul.mubr.bf16.gmra.mrb[0].mxu0 %v450
      %v486 = vpop.f32.mrb[0].mxu0
      %v487 = vadd.f32 0.0, %v486
      %v488 = vpop.f32.mrb[0].mxu0
      %v489 = vpop.f32.mrb[0].mxu0
      %v490 = vpop.f32.mrb[0].mxu0
      %491 = vdwg.mxu0
      %v492 = vadd.f32 %v418, %v487
      %v493 = vld [vmem:[%s3] sm:$0x1]
      %v495 = vlaneseq
      %v496 = vshrl.u32 %v495, 7
      %v497 = vsub.s32 0, %v496
      %v498 = vrot.slane %v493, %v497
      %v500 = vadd.f32 %v492, %v498
      %v501 = vmax.f32 %v500, 0.0
      %v502 = vrot.slane %v501, 7
      %v503 = vsel %vm293, %v502, 0.0
      %v504 = vpack.c.bf16 %v503, %v503
      %v505 = vld [vmem:[%s4] sm:$0xf]
      %v506 = vld [vmem:[%s4 + $0x4] sm:$0xf]
      %v507 = vld [vmem:[%s4 + $0x8] sm:$0xf]
      %v508 = vld [vmem:[%s4 + $0xc] sm:$0xf]
      %v509 = vld [vmem:[%s4 + $0x10] sm:$0xf]
      %v510 = vld [vmem:[%s4 + $0x14] sm:$0xf]
      %v511 = vld [vmem:[%s4 + $0x18] sm:$0xf]
      %v512 = vld [vmem:[%s4 + $0x1c] sm:$0xf]
      %v513 = vsel %vm304, %v501, 0.0
      %v514 = vpack.c.bf16 %v513, %v513
      %s515 = scalar_lea.vmem %s4, 32
      %v516 = vld [vmem:[%s515] sm:$0xf]
      %v517 = vld [vmem:[%s515 + $0x4] sm:$0xf]
      %v518 = vld [vmem:[%s515 + $0x8] sm:$0xf]
      %v519 = vld [vmem:[%s515 + $0xc] sm:$0xf]
      %v520 = vld [vmem:[%s515 + $0x10] sm:$0xf]
      %v521 = vld [vmem:[%s515 + $0x14] sm:$0xf]
      %v522 = vld [vmem:[%s515 + $0x18] sm:$0xf]
      %v523 = vld [vmem:[%s515 + $0x1c] sm:$0xf]
      %v532 = vunpack.c.l.b16 %v516
      %v533 = vunpack.c.l.b16 %v517
      %v534 = vunpack.c.l.b16 %v518
      %v535 = vunpack.c.l.b16 %v519
      %v536 = vunpack.c.l.b16 %v520
      %v537 = vunpack.c.l.b16 %v521
      %v538 = vunpack.c.l.b16 %v522
      %v539 = vunpack.c.l.b16 %v523
      %v540 = vpack.c.b16 %v533, %v532
      %v541 = vpack.c.b16 %v535, %v534
      %v542 = vpack.c.b16 %v537, %v536
      %v543 = vpack.c.b16 %v539, %v538
      %vm548 = vcmask 523264
      %v550 = vsel %vm548, %v514, 0
      %552 = vmatprep.subr.bf16.mxu0 0
      %553 = vmatpush1.bf16.msra.mxu0 %v540
      %554 = vmatprep.subr.bf16.mxu0 0
      %555 = vmatpush1.bf16.msra.mxu0 %v541
      %556 = vmatprep.subr.bf16.mxu0 0
      %557 = vmatpush1.bf16.msra.mxu0 %v542
      %558 = vmatprep.subr.bf16.mxu0 0
      %559 = vmatpush1.bf16.msra.mxu0 %v543
      %560 = vmatprep.subr.bf16.mxu0 0
      %561 = vmatpush1.bf16.msra.mxu0 0
      %562 = vmatprep.subr.bf16.mxu0 0
      %563 = vmatpush1.bf16.msra.mxu0 0
      %564 = vmatprep.subr.bf16.mxu0 0
      %565 = vmatpush1.bf16.msra.mxu0 0
      %566 = vmatprep.subr.bf16.mxu0 0
      %567 = vmatpush1.bf16.msra.mxu0 0
      %568 = vmatprep.subr.bf16.mxu0 0
      %569 = vmatpush1.bf16.msra.mxu0 0
      %570 = vmatprep.subr.bf16.mxu0 0
      %571 = vmatpush1.bf16.msra.mxu0 0
      %572 = vmatprep.subr.bf16.mxu0 0
      %573 = vmatpush1.bf16.msra.mxu0 0
      %574 = vmatprep.subr.bf16.mxu0 0
      %575 = vmatpush1.bf16.msra.mxu0 0
      %576 = vmatprep.subr.bf16.mxu0 0
      %577 = vmatpush1.bf16.msra.mxu0 0
      %578 = vmatprep.subr.bf16.mxu0 0
      %579 = vmatpush1.bf16.msra.mxu0 0
      %580 = vmatprep.subr.bf16.mxu0 0
      %581 = vmatpush1.bf16.msra.mxu0 0
      %582 = vmatprep.subr.bf16.mxu0 0
      %583 = vmatpush1.bf16.msra.mxu0 0
      %584 = vmatprep.mubr.bf16.mxu0 0
      %585 = vmatmul.mubr.bf16.gmra.mrb[0].mxu0 %v550
      %v586 = vpop.f32.mrb[0].mxu0
      %v587 = vadd.f32 0.0, %v586
      %v588 = vpop.f32.mrb[0].mxu0
      %v589 = vpop.f32.mrb[0].mxu0
      %v590 = vpop.f32.mrb[0].mxu0
      %591 = vdwg.mxu0
      %v600 = vunpack.c.l.b16 %v505
      %v601 = vunpack.c.l.b16 %v506
      %v602 = vunpack.c.l.b16 %v507
      %v603 = vunpack.c.l.b16 %v508
      %v604 = vunpack.c.l.b16 %v509
      %v605 = vunpack.c.l.b16 %v510
      %v606 = vunpack.c.l.b16 %v511
      %v607 = vunpack.c.l.b16 %v512
      %v608 = vpack.c.b16 %v601, %v600
      %v609 = vpack.c.b16 %v603, %v602
      %v610 = vpack.c.b16 %v605, %v604
      %v611 = vpack.c.b16 %v607, %v606
      %v617 = vsel %vm548, %v504, 0
      %619 = vmatprep.subr.bf16.mxu0 0
      %620 = vmatpush1.bf16.msra.mxu0 %v608
      %621 = vmatprep.subr.bf16.mxu0 0
      %622 = vmatpush1.bf16.msra.mxu0 %v609
      %623 = vmatprep.subr.bf16.mxu0 0
      %624 = vmatpush1.bf16.msra.mxu0 %v610
      %625 = vmatprep.subr.bf16.mxu0 0
      %626 = vmatpush1.bf16.msra.mxu0 %v611
      %627 = vmatprep.subr.bf16.mxu0 0
      %628 = vmatpush1.bf16.msra.mxu0 0
      %629 = vmatprep.subr.bf16.mxu0 0
      %630 = vmatpush1.bf16.msra.mxu0 0
      %631 = vmatprep.subr.bf16.mxu0 0
      %632 = vmatpush1.bf16.msra.mxu0 0
      %633 = vmatprep.subr.bf16.mxu0 0
      %634 = vmatpush1.bf16.msra.mxu0 0
      %635 = vmatprep.subr.bf16.mxu0 0
      %636 = vmatpush1.bf16.msra.mxu0 0
      %637 = vmatprep.subr.bf16.mxu0 0
      %638 = vmatpush1.bf16.msra.mxu0 0
      %639 = vmatprep.subr.bf16.mxu0 0
      %640 = vmatpush1.bf16.msra.mxu0 0
      %641 = vmatprep.subr.bf16.mxu0 0
      %642 = vmatpush1.bf16.msra.mxu0 0
      %643 = vmatprep.subr.bf16.mxu0 0
      %644 = vmatpush1.bf16.msra.mxu0 0
      %645 = vmatprep.subr.bf16.mxu0 0
      %646 = vmatpush1.bf16.msra.mxu0 0
      %647 = vmatprep.subr.bf16.mxu0 0
      %648 = vmatpush1.bf16.msra.mxu0 0
      %649 = vmatprep.subr.bf16.mxu0 0
      %650 = vmatpush1.bf16.msra.mxu0 0
      %651 = vmatprep.mubr.bf16.mxu0 0
      %652 = vmatmul.mubr.bf16.gmra.mrb[0].mxu0 %v617
      %v653 = vpop.f32.mrb[0].mxu0
      %v654 = vadd.f32 %v587, %v653
      %v655 = vpop.f32.mrb[0].mxu0
      %v656 = vpop.f32.mrb[0].mxu0
      %v657 = vpop.f32.mrb[0].mxu0
      %658 = vdwg.mxu0
      %v659 = vrot.slane %v501, 1
      %v660 = vsel %vm429, %v659, 0.0
      %v661 = vpack.c.bf16 %v660, %v660
      %s662 = scalar_lea.vmem %s4, 64
      %v663 = vld [vmem:[%s662] sm:$0xf]
      %v664 = vld [vmem:[%s662 + $0x4] sm:$0xf]
      %v665 = vld [vmem:[%s662 + $0x8] sm:$0xf]
      %v666 = vld [vmem:[%s662 + $0xc] sm:$0xf]
      %v667 = vld [vmem:[%s662 + $0x10] sm:$0xf]
      %v668 = vld [vmem:[%s662 + $0x14] sm:$0xf]
      %v669 = vld [vmem:[%s662 + $0x18] sm:$0xf]
      %v670 = vld [vmem:[%s662 + $0x1c] sm:$0xf]
      %v679 = vunpack.c.l.b16 %v663
      %v680 = vunpack.c.l.b16 %v664
      %v681 = vunpack.c.l.b16 %v665
      %v682 = vunpack.c.l.b16 %v666
      %v683 = vunpack.c.l.b16 %v667
      %v684 = vunpack.c.l.b16 %v668
      %v685 = vunpack.c.l.b16 %v669
      %v686 = vunpack.c.l.b16 %v670
      %v687 = vpack.c.b16 %v680, %v679
      %v688 = vpack.c.b16 %v682, %v681
      %v689 = vpack.c.b16 %v684, %v683
      %v690 = vpack.c.b16 %v686, %v685
      %v696 = vsel %vm548, %v661, 0
      %698 = vmatprep.subr.bf16.mxu0 0
      %699 = vmatpush1.bf16.msra.mxu0 %v687
      %700 = vmatprep.subr.bf16.mxu0 0
      %701 = vmatpush1.bf16.msra.mxu0 %v688
      %702 = vmatprep.subr.bf16.mxu0 0
      %703 = vmatpush1.bf16.msra.mxu0 %v689
      %704 = vmatprep.subr.bf16.mxu0 0
      %705 = vmatpush1.bf16.msra.mxu0 %v690
      %706 = vmatprep.subr.bf16.mxu0 0
      %707 = vmatpush1.bf16.msra.mxu0 0
      %708 = vmatprep.subr.bf16.mxu0 0
      %709 = vmatpush1.bf16.msra.mxu0 0
      %710 = vmatprep.subr.bf16.mxu0 0
      %711 = vmatpush1.bf16.msra.mxu0 0
      %712 = vmatprep.subr.bf16.mxu0 0
      %713 = vmatpush1.bf16.msra.mxu0 0
      %714 = vmatprep.subr.bf16.mxu0 0
      %715 = vmatpush1.bf16.msra.mxu0 0
      %716 = vmatprep.subr.bf16.mxu0 0
      %717 = vmatpush1.bf16.msra.mxu0 0
      %718 = vmatprep.subr.bf16.mxu0 0
      %719 = vmatpush1.bf16.msra.mxu0 0
      %720 = vmatprep.subr.bf16.mxu0 0
      %721 = vmatpush1.bf16.msra.mxu0 0
      %722 = vmatprep.subr.bf16.mxu0 0
      %723 = vmatpush1.bf16.msra.mxu0 0
      %724 = vmatprep.subr.bf16.mxu0 0
      %725 = vmatpush1.bf16.msra.mxu0 0
      %726 = vmatprep.subr.bf16.mxu0 0
      %727 = vmatpush1.bf16.msra.mxu0 0
      %728 = vmatprep.subr.bf16.mxu0 0
      %729 = vmatpush1.bf16.msra.mxu0 0
      %730 = vmatprep.mubr.bf16.mxu0 0
      %731 = vmatmul.mubr.bf16.gmra.mrb[0].mxu0 %v696
      %v732 = vpop.f32.mrb[0].mxu0
      %v733 = vadd.f32 0.0, %v732
      %v734 = vpop.f32.mrb[0].mxu0
      %v735 = vpop.f32.mrb[0].mxu0
      %v736 = vpop.f32.mrb[0].mxu0
      %737 = vdwg.mxu0
      %v738 = vadd.f32 %v654, %v733
      %v739 = vld [vmem:[%s5] sm:$0x1]
      %v741 = vlaneseq
      %v742 = vshrl.u32 %v741, 7
      %v743 = vsub.s32 0, %v742
      %v744 = vrot.slane %v739, %v743
      %v746 = vadd.f32 %v738, %v744
      %v747 = vsel %vm301, 1, 0
      %vm748 = vcmp.eq.s32.totalorder %v747, 1
      %v749 = vsel %vm748, %v746, 0.0
      %v750 = vadd.f32 %v283, %v749
      %v751 = vsel %vm324, %v750, 0.0
      %752 = vadd.xlane.f32.xlu0 %v751
      %v753 = vpop.xlane.xlu0 %752
      %v754 = vrcp.pop 32.0
      %v755 = vmul.f32 %v753, %v754
      %v756 = vsub.f32 %v750, %v755
      %v757 = vmul.f32 %v756, %v756
      %v758 = vsel %vm324, %v757, 0.0
      %759 = vadd.xlane.f32.xlu0 %v758
      %v760 = vpop.xlane.xlu0 %759
      %v761 = vmul.f32 %v760, %v754
      %v762 = vadd.f32 %v761, 1e-05
      %v763 = vrsqrt.pop %v762
      %v764 = vmul.f32 %v756, %v763
      %v765 = vld [vmem:[%s6] sm:$0x1]
      %v767 = vlaneseq
      %v768 = vshrl.u32 %v767, 7
      %v769 = vsub.s32 0, %v768
      %v770 = vrot.slane %v765, %v769
      %v772 = vmul.f32 %v764, %v770
      %v773 = vld [vmem:[%s7] sm:$0x1]
      %v775 = vlaneseq
      %v776 = vshrl.u32 %v775, 7
      %v777 = vsub.s32 0, %v776
      %v778 = vrot.slane %v773, %v777
      %v780 = vadd.f32 %v772, %v778
      %781 = vst.msk [vmem:[%s280] sm:$0xff] %vm324, %v780
      %p782 = scmp.lt.s32.totalorder %s25, 1
      %s783 = scalar_select %p782, %s25, 1
      %s784 = smul.addr %s783, 8
      %s785 = scalar_lea.vmem %s8, %s784
      // Predicated region
      $region49: #{forward.11} parent=47 // pred_check
        %p786 = pneg %p195
      $region50: #{forward.11} parent=47 // pred_check_branch
        %788 = sbr.rel (%p786) target = $region52
      $region51: #{forward.11} parent=47 // pred_region
        _
      $region52: #{forward.11} parent=47 // pred_fallthru
        _
    $region48: #{forward.11} parent=5 // pred_fallthru
      _
    %p789 = scmp.le.s32.totalorder 2, %s20
    // Predicated region
    $region53: #{forward.11} parent=5 // pred_check
      %p790 = pneg %p789
    $region54: #{forward.11} parent=5 // pred_check_branch
      %792 = sbr.rel (%p790) target = $region56
    $region55: #{forward.11} parent=5 // pred_region
      %s793 = ssub.s32 %s20, 2
      // Predicated region
      $region57: #{forward.11} parent=55 // pred_check
        %p794 = pneg %p201
      $region58: #{forward.11} parent=55 // pred_check_branch
        %796 = sbr.rel (%p794) target = $region60
      $region59: #{forward.11} parent=55 // pred_region
        %p797 = scmp.lt.s32.totalorder %s26, 1
        %s798 = scalar_select %p797, %s26, 1
        %s799 = smul.addr %s798, 8
        %s800 = scalar_lea.vmem %s8, %s799
      $region60: #{forward.11} parent=55 // pred_fallthru
        _
    $region56: #{forward.11} parent=5 // pred_fallthru
      _
  $region6: #{forward.11} parent=0 // loop_footer
    %s24 = sadd.s32 1, %s20
  $region7: #{forward.11} parent=0 // loop_footer_branch
    %19 = sbr.rel target = $region3
  $region8: #{forward.11} parent=0 // loop_exit
    _

</llo_original>
